<compile_context>
chip_gen: v7x
topology: tpu7x:2x2x1
jax: 0.10.0
libtpu: 0.0.40
codegen_flags: <defaults>
</compile_context>

<pallas_src>
import functools
import math

import jax
import jax.numpy as jnp
from jax.experimental import pallas as pl
from jax.experimental.pallas import tpu as pltpu


def _round_up(v, m):
    return -(-v // m) * m


def masked_conv_kernel(x_ref, w_ref, o_ref, *, taps, lo):
    # x_ref: (1, C_in, Lf)        flattened replicate-padded image (one batch elem)
    # w_ref: (KH*KW, C_out, C_in) masked weights, tap-major (resident)
    # o_ref: (1, C_out, Lo)       flattened stride-1 conv output, Lo lane-dense
    x = x_ref[0]                                  # (C_in, Lf) -- loaded once per step
    acc = jnp.zeros(o_ref.shape[1:], jnp.float32)
    for t, off in enumerate(taps):                # static unroll over KH*KW taps
        slab = x[:, off:off + lo]                 # (C_in, Lo) static lane slice (VMEM, no HBM)
        acc = acc + jnp.dot(w_ref[t], slab,       # (C_out,C_in) @ (C_in,Lo) on MXU
                            preferred_element_type=jnp.float32)
    o_ref[0] = acc.astype(o_ref.dtype)


def masked_conv2d(x, weight, mask, stride=1, padding=0):
    """x: (N, C, H, W) f32.  weight/mask: (C, C, KH, KW).  Returns NCHW conv output."""
    n, c_in, h, w = x.shape
    c_out, c_in2, kh, kw = weight.shape
    assert c_in2 == c_in

    w_eff = (weight * mask).astype(jnp.float32)   # MaskedConv2d: weight.data *= mask

    # padding_mode='replicate' -> edge padding (single cheap wrapper pass, ~1x traffic)
    xp = jnp.pad(x, ((0, 0), (0, 0), (padding, padding), (padding, padding)), mode="edge")
    hp, wp = h + 2 * padding, w + 2 * padding
    oh1, ow1 = hp - kh + 1, wp - kw + 1           # stride-1 output extent

    lo = _round_up(oh1 * wp, 128)                 # lane-dense output length per image
    max_off = (kh - 1) * wp + (kw - 1)
    lf = _round_up(lo + max_off, 128)             # flattened input length (incl. slack)

    # (N,C,HP,WP) -> (N,C,HP*WP), zero-pad flat axis to Lf (slack only feeds garbage lanes)
    xf = xp.reshape(n, c_in, hp * wp)
    xf = jnp.pad(xf, ((0, 0), (0, 0), (0, lf - hp * wp)))

    # tap-major weights: tap t = i*KW + j  ->  (C_out, C_in)
    w_taps = jnp.transpose(w_eff, (2, 3, 0, 1)).reshape(kh * kw, c_out, c_in)
    taps = tuple(i * wp + j for i in range(kh) for j in range(kw))

    kern = functools.partial(masked_conv_kernel, taps=taps, lo=lo)
    out_flat = pl.pallas_call(
        kern,
        out_shape=jax.ShapeDtypeStruct((n, c_out, lo), jnp.float32),
        grid=(n,),
        in_specs=[
            pl.BlockSpec((1, c_in, lf), lambda b: (b, 0, 0)),
            pl.BlockSpec((kh * kw, c_out, c_in), lambda b: (0, 0, 0)),  # resident weights
        ],
        out_specs=pl.BlockSpec((1, c_out, lo), lambda b: (b, 0, 0)),
        compiler_params=pltpu.CompilerParams(dimension_semantics=("parallel",)),
    )(xf, w_taps)

    # Drop lane padding + garbage row-pitch columns, then apply stride by subsampling.
    # TODO(synk): for stride>1, fold the row stride into the tap offsets to avoid
    # computing the full stride-1 output; stride=1 (the common case) is unaffected.
    out1 = out_flat[:, :, : oh1 * wp].reshape(n, c_out, oh1, wp)[:, :, :, :ow1]
    oh_s = (h + 2 * padding - kh) // stride + 1
    ow_s = (w + 2 * padding - kw) // stride + 1
    return out1[:, :, ::stride, ::stride][:, :, :oh_s, :ow_s]


def weight_mask(in_channels, kernel_size):
    # TODO(synk): utils.weight_mask is external to the spec; this is a representative
    # deterministic autoregressive (PixelCNN-style) mask. The kernel is mask-agnostic.
    k, c = kernel_size, in_channels
    hh, ww = jnp.meshgrid(jnp.arange(k), jnp.arange(k), indexing="ij")
    ctr = k // 2
    before = ((hh < ctr) | ((hh == ctr) & (ww < ctr))).astype(jnp.float32)        # (k,k)
    center = ((hh == ctr) & (ww == ctr)).astype(jnp.float32)                      # (k,k)
    chan = (jnp.arange(c)[None, :] < jnp.arange(c)[:, None]).astype(jnp.float32)  # (cout,cin)
    return before[None, None] + center[None, None] * chan[:, :, None, None]       # (c,c,k,k)


if __name__ == "__main__":
    in_channels, kernel_size, stride, padding = 4, 3, 1, 1
    N, H, W = 2, 16, 16

    key = jax.random.PRNGKey(0)
    kx, kw_ = jax.random.split(key, 2)
    x = jax.random.normal(kx, (N, in_channels, H, W), dtype=jnp.float32)

    # Note: the PyTorch module zero-inits the conv weight (trivial all-zero output);
    # use random weights so the correctness check is meaningful. Mask is still applied.
    fan_in = in_channels * kernel_size * kernel_size
    weight = jax.random.normal(
        kw_, (in_channels, in_channels, kernel_size, kernel_size),
        dtype=jnp.float32) * math.sqrt(2.0 / fan_in)
    mask = weight_mask(in_channels, kernel_size)

    out = masked_conv2d(x, weight, mask, stride=stride, padding=padding)
    jax.block_until_ready(out)

    # Reference: replicate-pad then VALID conv with the masked weight.
    w_eff = weight * mask
    xp = jnp.pad(x, ((0, 0), (0, 0), (padding, padding), (padding, padding)), mode="edge")
    ref = jax.lax.conv_general_dilated(
        xp, w_eff, window_strides=(stride, stride), padding="VALID",
        dimension_numbers=("NCHW", "OIHW", "NCHW"),
        precision=jax.lax.Precision.HIGHEST)

    assert out.shape == ref.shape, (out.shape, ref.shape)
    assert jnp.allclose(out, ref, atol=1e-3, rtol=1e-3)
    print("KERNEL_OK")
</pallas_src>

<mosaic_0001>
module attributes {stable_mosaic.version = 11 : i64} {
  func.func @masked_conv_kernel(%arg0: i32, %arg1: memref<1x4x512xf32, #tpu.memory_space<vmem>>, %arg2: memref<9x4x4xf32, #tpu.memory_space<vmem>>, %arg3: memref<1x4x384xf32, #tpu.memory_space<vmem>>) attributes {dimension_semantics = [#tpu.dimension_semantics<parallel>], iteration_bounds = array<i64: 2>, scalar_prefetch = 0 : i64, scratch_operands = 0 : i64, tpu.core_type = #tpu.core_type<tc>, window_params = [{transform_indices = @transform_0, window_bounds = array<i64: 1, 4, 512>}, {pipeline_mode = #tpu.pipeline_mode<synchronous>, transform_indices = @transform_1, window_bounds = array<i64: 9, 4, 4>}, {transform_indices = @transform_2, window_bounds = array<i64: 1, 4, 384>}]} {
    %c0 = arith.constant 0 : index
    %c0_0 = arith.constant 0 : index
    %c0_1 = arith.constant 0 : index
    %0 = vector.load %arg1[%c0, %c0_0, %c0_1] : memref<1x4x512xf32, #tpu.memory_space<vmem>>, vector<1x4x512xf32>
    %1 = vector.shape_cast %0 : vector<1x4x512xf32> to vector<4x512xf32>
    %cst = arith.constant 0.000000e+00 : f32
    %2 = vector.broadcast %cst : f32 to vector<4x384xf32>
    %3 = vector.extract_strided_slice %1 {offsets = [0, 0], sizes = [4, 384], strides = [1, 1]} : vector<4x512xf32> to vector<4x384xf32>
    %c0_2 = arith.constant 0 : index
    %c0_3 = arith.constant 0 : index
    %c0_4 = arith.constant 0 : index
    %4 = vector.load %arg2[%c0_2, %c0_3, %c0_4] : memref<9x4x4xf32, #tpu.memory_space<vmem>>, vector<1x4x4xf32>
    %5 = vector.shape_cast %4 : vector<1x4x4xf32> to vector<4x4xf32>
    %cst_5 = arith.constant dense<0.000000e+00> : vector<4x384xf32>
    %6 = tpu.matmul %5, %3, %cst_5 {dimension_numbers = #tpu.dot_dimension_numbers<[1], [0], [0], [1], [0, 0, 1, 1], [], []>} : vector<4x4xf32>, vector<4x384xf32>, vector<4x384xf32> -> vector<4x384xf32>
    %7 = arith.addf %2, %6 : vector<4x384xf32>
    %8 = vector.extract_strided_slice %1 {offsets = [0, 1], sizes = [4, 384], strides = [1, 1]} : vector<4x512xf32> to vector<4x384xf32>
    %c1 = arith.constant 1 : index
    %c0_6 = arith.constant 0 : index
    %c0_7 = arith.constant 0 : index
    %9 = vector.load %arg2[%c1, %c0_6, %c0_7] : memref<9x4x4xf32, #tpu.memory_space<vmem>>, vector<1x4x4xf32>
    %10 = vector.shape_cast %9 : vector<1x4x4xf32> to vector<4x4xf32>
    %cst_8 = arith.constant dense<0.000000e+00> : vector<4x384xf32>
    %11 = tpu.matmul %10, %8, %cst_8 {dimension_numbers = #tpu.dot_dimension_numbers<[1], [0], [0], [1], [0, 0, 1, 1], [], []>} : vector<4x4xf32>, vector<4x384xf32>, vector<4x384xf32> -> vector<4x384xf32>
    %12 = arith.addf %7, %11 : vector<4x384xf32>
    %13 = vector.extract_strided_slice %1 {offsets = [0, 2], sizes = [4, 384], strides = [1, 1]} : vector<4x512xf32> to vector<4x384xf32>
    %c2 = arith.constant 2 : index
    %c0_9 = arith.constant 0 : index
    %c0_10 = arith.constant 0 : index
    %14 = vector.load %arg2[%c2, %c0_9, %c0_10] : memref<9x4x4xf32, #tpu.memory_space<vmem>>, vector<1x4x4xf32>
    %15 = vector.shape_cast %14 : vector<1x4x4xf32> to vector<4x4xf32>
    %cst_11 = arith.constant dense<0.000000e+00> : vector<4x384xf32>
    %16 = tpu.matmul %15, %13, %cst_11 {dimension_numbers = #tpu.dot_dimension_numbers<[1], [0], [0], [1], [0, 0, 1, 1], [], []>} : vector<4x4xf32>, vector<4x384xf32>, vector<4x384xf32> -> vector<4x384xf32>
    %17 = arith.addf %12, %16 : vector<4x384xf32>
    %18 = vector.extract_strided_slice %1 {offsets = [0, 18], sizes = [4, 384], strides = [1, 1]} : vector<4x512xf32> to vector<4x384xf32>
    %c3 = arith.constant 3 : index
    %c0_12 = arith.constant 0 : index
    %c0_13 = arith.constant 0 : index
    %19 = vector.load %arg2[%c3, %c0_12, %c0_13] : memref<9x4x4xf32, #tpu.memory_space<vmem>>, vector<1x4x4xf32>
    %20 = vector.shape_cast %19 : vector<1x4x4xf32> to vector<4x4xf32>
    %cst_14 = arith.constant dense<0.000000e+00> : vector<4x384xf32>
    %21 = tpu.matmul %20, %18, %cst_14 {dimension_numbers = #tpu.dot_dimension_numbers<[1], [0], [0], [1], [0, 0, 1, 1], [], []>} : vector<4x4xf32>, vector<4x384xf32>, vector<4x384xf32> -> vector<4x384xf32>
    %22 = arith.addf %17, %21 : vector<4x384xf32>
    %23 = vector.extract_strided_slice %1 {offsets = [0, 19], sizes = [4, 384], strides = [1, 1]} : vector<4x512xf32> to vector<4x384xf32>
    %c4 = arith.constant 4 : index
    %c0_15 = arith.constant 0 : index
    %c0_16 = arith.constant 0 : index
    %24 = vector.load %arg2[%c4, %c0_15, %c0_16] : memref<9x4x4xf32, #tpu.memory_space<vmem>>, vector<1x4x4xf32>
    %25 = vector.shape_cast %24 : vector<1x4x4xf32> to vector<4x4xf32>
    %cst_17 = arith.constant dense<0.000000e+00> : vector<4x384xf32>
    %26 = tpu.matmul %25, %23, %cst_17 {dimension_numbers = #tpu.dot_dimension_numbers<[1], [0], [0], [1], [0, 0, 1, 1], [], []>} : vector<4x4xf32>, vector<4x384xf32>, vector<4x384xf32> -> vector<4x384xf32>
    %27 = arith.addf %22, %26 : vector<4x384xf32>
    %28 = vector.extract_strided_slice %1 {offsets = [0, 20], sizes = [4, 384], strides = [1, 1]} : vector<4x512xf32> to vector<4x384xf32>
    %c5 = arith.constant 5 : index
    %c0_18 = arith.constant 0 : index
    %c0_19 = arith.constant 0 : index
    %29 = vector.load %arg2[%c5, %c0_18, %c0_19] : memref<9x4x4xf32, #tpu.memory_space<vmem>>, vector<1x4x4xf32>
    %30 = vector.shape_cast %29 : vector<1x4x4xf32> to vector<4x4xf32>
    %cst_20 = arith.constant dense<0.000000e+00> : vector<4x384xf32>
    %31 = tpu.matmul %30, %28, %cst_20 {dimension_numbers = #tpu.dot_dimension_numbers<[1], [0], [0], [1], [0, 0, 1, 1], [], []>} : vector<4x4xf32>, vector<4x384xf32>, vector<4x384xf32> -> vector<4x384xf32>
    %32 = arith.addf %27, %31 : vector<4x384xf32>
    %33 = vector.extract_strided_slice %1 {offsets = [0, 36], sizes = [4, 384], strides = [1, 1]} : vector<4x512xf32> to vector<4x384xf32>
    %c6 = arith.constant 6 : index
    %c0_21 = arith.constant 0 : index
    %c0_22 = arith.constant 0 : index
    %34 = vector.load %arg2[%c6, %c0_21, %c0_22] : memref<9x4x4xf32, #tpu.memory_space<vmem>>, vector<1x4x4xf32>
    %35 = vector.shape_cast %34 : vector<1x4x4xf32> to vector<4x4xf32>
    %cst_23 = arith.constant dense<0.000000e+00> : vector<4x384xf32>
    %36 = tpu.matmul %35, %33, %cst_23 {dimension_numbers = #tpu.dot_dimension_numbers<[1], [0], [0], [1], [0, 0, 1, 1], [], []>} : vector<4x4xf32>, vector<4x384xf32>, vector<4x384xf32> -> vector<4x384xf32>
    %37 = arith.addf %32, %36 : vector<4x384xf32>
    %38 = vector.extract_strided_slice %1 {offsets = [0, 37], sizes = [4, 384], strides = [1, 1]} : vector<4x512xf32> to vector<4x384xf32>
    %c7 = arith.constant 7 : index
    %c0_24 = arith.constant 0 : index
    %c0_25 = arith.constant 0 : index
    %39 = vector.load %arg2[%c7, %c0_24, %c0_25] : memref<9x4x4xf32, #tpu.memory_space<vmem>>, vector<1x4x4xf32>
    %40 = vector.shape_cast %39 : vector<1x4x4xf32> to vector<4x4xf32>
    %cst_26 = arith.constant dense<0.000000e+00> : vector<4x384xf32>
    %41 = tpu.matmul %40, %38, %cst_26 {dimension_numbers = #tpu.dot_dimension_numbers<[1], [0], [0], [1], [0, 0, 1, 1], [], []>} : vector<4x4xf32>, vector<4x384xf32>, vector<4x384xf32> -> vector<4x384xf32>
    %42 = arith.addf %37, %41 : vector<4x384xf32>
    %43 = vector.extract_strided_slice %1 {offsets = [0, 38], sizes = [4, 384], strides = [1, 1]} : vector<4x512xf32> to vector<4x384xf32>
    %c8 = arith.constant 8 : index
    %c0_27 = arith.constant 0 : index
    %c0_28 = arith.constant 0 : index
    %44 = vector.load %arg2[%c8, %c0_27, %c0_28] : memref<9x4x4xf32, #tpu.memory_space<vmem>>, vector<1x4x4xf32>
    %45 = vector.shape_cast %44 : vector<1x4x4xf32> to vector<4x4xf32>
    %cst_29 = arith.constant dense<0.000000e+00> : vector<4x384xf32>
    %46 = tpu.matmul %45, %43, %cst_29 {dimension_numbers = #tpu.dot_dimension_numbers<[1], [0], [0], [1], [0, 0, 1, 1], [], []>} : vector<4x4xf32>, vector<4x384xf32>, vector<4x384xf32> -> vector<4x384xf32>
    %47 = arith.addf %42, %46 : vector<4x384xf32>
    %c0_30 = arith.constant 0 : index
    %c0_31 = arith.constant 0 : index
    %c0_32 = arith.constant 0 : index
    %48 = vector.load %arg3[%c0_30, %c0_31, %c0_32] : memref<1x4x384xf32, #tpu.memory_space<vmem>>, vector<1x4x384xf32>
    %49 = vector.shape_cast %48 : vector<1x4x384xf32> to vector<4x384xf32>
    %50 = vector.shape_cast %47 : vector<4x384xf32> to vector<1x4x384xf32>
    tpu.vector_store %arg3[%c0_30, %c0_31, %c0_32], %50 {strides = array<i32>} : memref<1x4x384xf32, #tpu.memory_space<vmem>>, vector<1x4x384xf32>,
    return
  }
  func.func @transform_0(%arg0: i32) -> (i32, i32, i32) {
    %c0_i32 = arith.constant 0 : i32
    %c0_i32_0 = arith.constant 0 : i32
    %c0_i32_1 = arith.constant 0 : i32
    return %arg0, %c0_i32, %c0_i32_0 : i32, i32, i32
  }
  func.func @transform_1(%arg0: i32) -> (i32, i32, i32) {
    %c0_i32 = arith.constant 0 : i32
    %c0_i32_0 = arith.constant 0 : i32
    %c0_i32_1 = arith.constant 0 : i32
    %c0_i32_2 = arith.constant 0 : i32
    return %c0_i32, %c0_i32_0, %c0_i32_1 : i32, i32, i32
  }
  func.func @transform_2(%arg0: i32) -> (i32, i32, i32) {
    %c0_i32 = arith.constant 0 : i32
    %c0_i32_0 = arith.constant 0 : i32
    %c0_i32_1 = arith.constant 0 : i32
    return %arg0, %c0_i32, %c0_i32_0 : i32, i32, i32
  }
}

</mosaic_0001>

<llo_original>
// kernel: tpu_custom_call.1
$region0: #{tpu_custom_call.1}
  #allocation0 [shape = 'u32[]', space=smem, size = 0x4, offset = 0x4, fixed_abs, tag = 'smem constant byte address 0x4 - core index']
  #allocation1 [shape = 'u32[144,128]{1,0:T(1,128)}', space=vmem, size = 0x12000, scoped, tag = 'internal scratch']
  %s0 = inlined_call_operand.vmem [shape: f32[2,4,512], index: 0, kind: input, shape index: {}]
  %s1 = inlined_call_operand.vmem [shape: f32[9,4,4], index: 1, kind: input, shape index: {}]
  %s2 = inlined_call_operand.hbm [shape: f32[2,4,384], index: 2, kind: output, shape index: {}]
  %s3 = sld [smem:[#allocation0]]
  $region41: #{tpu_custom_call.1} parent=0
    _
  %s5 = ssub.s32 1, %s3
  %s6 = scalar_select 0, %s5, %s3
  $region1: #{tpu_custom_call.1} parent=0
    #allocation2 [shape = 'u8[12288]{0}', space=vmem, size = 0x3000, scoped, tag = 'output window, operand 0']
    #allocation3 [shape = 's32[2]{0}', space=sflag, size = 0x8, scoped, tag = 'scoped memory for tpu_custom_call.1']
    %7 = vsyncpa [#allocation3], 0
    %s8 = scalar_lea.sflag [#allocation3], 1
    %9 = vsyncpa %s8, 0
    loop: start=0, step=1, limit=4
    $region2: #{tpu_custom_call.1} parent=1 // loop_pre_header
      _
    $region3: #{tpu_custom_call.1} parent=1 // loop_header
      %s11 = sphi 0, %s15
      %p12 = scmp.ge.s32.totalorder %s11, 4
      %s21 = sphi 0, %s23
      %s24 = sphi 0, %s21
      %s25 = sphi 0, %s24
      %s41 = sphi 0, %s25
      %s45 = sphi 0, %s45
      %s47 = sphi 0, %s45
      %s48 = sphi 0, %s47
      %s62 = sphi 0, %s48
      %s68 = sphi 0, %s70
      %s71 = sphi 0, %s68
      %s72 = sphi 0, %s71
      %s88 = sphi 0, %s72
    $region4: #{tpu_custom_call.1} parent=1 // loop_header_branch
      %14 = sbr.rel (%p12) target = $region8
    $region5: #{tpu_custom_call.1} parent=1 // loop_body
      %s16 = ssub.s32 %s11, 1
      %s17 = ssub.s32 %s11, 2
      %s18 = sadd.s32 %s11, 1
      %s19 = ssub.s32 %s11, %s18
      %p20 = scmp.eq.s32.totalorder %s19, 0
      %s22 = sadd.s32 %s21, 1
      %s23 = scalar_select %p20, %s21, %s22
      %p26 = pneg %p20
      %p27 = scmp.eq.s32.totalorder %s11, 1
      %p28 = por %p26, %p27
      %p29 = scmp.ne.s32.totalorder %s21, %s24
      %p30 = scmp.eq.s32.totalorder %s11, 0
      %p31 = por %p29, %p30
      %p32 = scmp.ne.s32.totalorder %s21, %s24
      %p33 = scmp.eq.s32.totalorder %s16, 1
      %p34 = por %p32, %p33
      %p35 = scmp.ne.s32.totalorder %s24, %s25
      %p36 = scmp.eq.s32.totalorder %s16, 0
      %p37 = por %p35, %p36
      %p38 = scmp.ne.s32.totalorder %s24, %s25
      %p39 = scmp.eq.s32.totalorder %s17, 1
      %p40 = por %p38, %p39
      %p42 = scmp.ne.s32.totalorder %s25, %s41
      %p43 = scmp.eq.s32.totalorder %s17, 0
      %p44 = por %p42, %p43
      %s46 = sadd.s32 %s45, 1
      %p49 = scmp.eq.s32.totalorder %s11, 1
      %p50 = scmp.ne.s32.totalorder %s45, %s47
      %p51 = scmp.eq.s32.totalorder %s11, 0
      %p52 = por %p50, %p51
      %p53 = scmp.ne.s32.totalorder %s45, %s47
      %p54 = scmp.eq.s32.totalorder %s16, 1
      %p55 = por %p53, %p54
      %p56 = scmp.ne.s32.totalorder %s47, %s48
      %p57 = scmp.eq.s32.totalorder %s16, 0
      %p58 = por %p56, %p57
      %p59 = scmp.ne.s32.totalorder %s47, %s48
      %p60 = scmp.eq.s32.totalorder %s17, 1
      %p61 = por %p59, %p60
      %p63 = scmp.ne.s32.totalorder %s48, %s62
      %p64 = scmp.eq.s32.totalorder %s17, 0
      %p65 = por %p63, %p64
      %s66 = ssub.s32 %s11, %s18
      %p67 = scmp.eq.s32.totalorder %s66, 0
      %s69 = sadd.s32 %s68, 1
      %s70 = scalar_select %p67, %s68, %s69
      %p73 = pneg %p67
      %p74 = scmp.eq.s32.totalorder %s11, 1
      %p75 = por %p73, %p74
      %p76 = scmp.ne.s32.totalorder %s68, %s71
      %p77 = scmp.eq.s32.totalorder %s11, 0
      %p78 = por %p76, %p77
      %p79 = scmp.ne.s32.totalorder %s68, %s71
      %p80 = scmp.eq.s32.totalorder %s16, 1
      %p81 = por %p79, %p80
      %p82 = scmp.ne.s32.totalorder %s71, %s72
      %p83 = scmp.eq.s32.totalorder %s16, 0
      %p84 = por %p82, %p83
      %p85 = scmp.ne.s32.totalorder %s71, %s72
      %p86 = scmp.eq.s32.totalorder %s17, 1
      %p87 = por %p85, %p86
      %p89 = scmp.ne.s32.totalorder %s72, %s88
      %p90 = scmp.eq.s32.totalorder %s17, 0
      %p91 = por %p89, %p90
      %p92 = scmp.le.s32.totalorder 1, %s11
      %p93 = scmp.lt.s32.totalorder %s11, 3
      %p94 = pnand %p92, %p93
      %p95 = pneg %p94
      // Predicated region
      $region9: #{tpu_custom_call.1} parent=5 // pred_check
        _
      $region10: #{tpu_custom_call.1} parent=5 // pred_check_branch
        %97 = sbr.rel (%p94) target = $region12
      $region11: #{tpu_custom_call.1} parent=5 // pred_region
        %s98 = ssub.s32 %s11, 1
        // Predicated region
        $region13: #{tpu_custom_call.1} parent=11 // pred_check
          %p99 = pneg %p58
        $region14: #{tpu_custom_call.1} parent=11 // pred_check_branch
          %101 = sbr.rel (%p99) target = $region16
        $region15: #{tpu_custom_call.1} parent=11 // pred_region
          _
        $region16: #{tpu_custom_call.1} parent=11 // pred_fallthru
          _
      $region12: #{tpu_custom_call.1} parent=5 // pred_fallthru
        _
      %p102 = scmp.lt.s32.totalorder %s11, 2
      // Predicated region
      $region17: #{tpu_custom_call.1} parent=5 // pred_check
        %p103 = pneg %p102
      $region18: #{tpu_custom_call.1} parent=5 // pred_check_branch
        %105 = sbr.rel (%p103) target = $region20
      $region19: #{tpu_custom_call.1} parent=5 // pred_region
        // Predicated region
        $region21: #{tpu_custom_call.1} parent=19 // pred_check
          %p106 = pneg %p31
        $region22: #{tpu_custom_call.1} parent=19 // pred_check_branch
          %108 = sbr.rel (%p106) target = $region24
        $region23: #{tpu_custom_call.1} parent=19 // pred_region
          %p109 = scmp.lt.s32.totalorder %s11, 1
          %s110 = scalar_select %p109, %s11, 1
          %s111 = smul.addr %s110, 4
          %s112 = smul.addr %s111, 4
          %s113 = scalar_lea.vmem %s0, %s112
        $region24: #{tpu_custom_call.1} parent=19 // pred_fallthru
          _
      $region20: #{tpu_custom_call.1} parent=5 // pred_fallthru
        _
      %p114 = scmp.le.s32.totalorder 1, %s11
      %p115 = scmp.lt.s32.totalorder %s11, 3
      %p116 = pnand %p114, %p115
      %p117 = pneg %p116
      // Predicated region
      $region25: #{tpu_custom_call.1} parent=5 // pred_check
        _
      $region26: #{tpu_custom_call.1} parent=5 // pred_check_branch
        %119 = sbr.rel (%p116) target = $region28
      $region27: #{tpu_custom_call.1} parent=5 // pred_region
        %s120 = ssub.s32 %s11, 1
        %p121 = scmp.lt.s32.totalorder %s16, 1
        %s122 = scalar_select %p121, %s16, 1
        %s123 = smul.addr %s122, 4
        %s124 = smul.addr %s123, 4
        %s125 = scalar_lea.vmem %s0, %s124
        %p126 = pneg %p37
        %p127 = pneg %p34
        %p128 = pneg %p58
        %p129 = pneg %p55
        %p130 = pneg %p84
        %p131 = pneg %p81
        %s132 = sand.u32 %s71, 1
        %s133 = scalar_lea.sflag [#allocation3], %s132
        %s134 = sand.u32 %s71, 1
        %s135 = smul.addr %s134, 12
        %s136 = scalar_lea.vmem [#allocation2], %s135
        %p137 = scmp.lt.s32.totalorder %s16, 1
        %s138 = scalar_select %p137, %s16, 1
        %s139 = smul.addr %s138, 4
        %s140 = smul.addr %s139, 4
        %s141 = scalar_lea.vmem %s0, %s140
        %v142 = vld [vmem:[%s141] sm:$0xff]
        %v143 = vld [vmem:[%s141 + $0x8] sm:$0xff]
        %v144 = vld [vmem:[%s1] sm:$0xf]
        %s145 = scalar_lea.vmem %s1, 4
        %v146 = vld [vmem:[%s145] sm:$0xf]
        %v149 = vcombine.high %v142, %v142
        %v150 = vcombine.high %v143, %v143
        %151 = vrot.lane.b32.xlu0 %v142, 127
        %v152 = vpop.permute.xlu0 %151
        %153 = vrot.lane.b32.xlu0 %v149, 127
        %v154 = vpop.permute.xlu0 %153
        %155 = vrot.lane.b32.xlu0 %v143, 127
        %v156 = vpop.permute.xlu0 %155
        %157 = vrot.lane.b32.xlu0 %v150, 127
        %v158 = vpop.permute.xlu0 %157
        %vm159 = vcmask 1039360
        %v160 = vsel %vm159, %v152, %v154
        %v161 = vsel %vm159, %v154, %v156
        %v162 = vsel %vm159, %v156, %v158
        %vm163 = vcmask 31744
        %v165 = vsel %vm163, %v146, 0
        %vm167 = vcmask 1043456
        %v168 = vsel %vm167, %v160, 0
        %v170 = vsel %vm167, %v161, 0
        %v172 = vsel %vm167, %v162, 0
        %174 = vmatprep.subr.mxu0 %v170
        %175 = vmatpush1.msra.mxu0 %v168
        %176 = vmatprep.subr.mxu0 0.0
        %177 = vmatpush1.msra.mxu0 0.0
        %178 = vmatprep.subr.mxu0 0.0
        %179 = vmatpush1.msra.mxu0 0.0
        %180 = vmatprep.subr.mxu0 0.0
        %181 = vmatpush1.msra.mxu0 0.0
        %182 = vmatprep.subr.mxu0 0.0
        %183 = vmatpush1.msra.mxu0 0.0
        %184 = vmatprep.subr.mxu0 0.0
        %185 = vmatpush1.msra.mxu0 0.0
        %186 = vmatprep.subr.mxu0 0.0
        %187 = vmatpush1.msra.mxu0 0.0
        %188 = vmatprep.subr.mxu0 0.0
        %189 = vmatpush1.msra.mxu0 0.0
        %190 = vmatprep.subr.mxu0 0.0
        %191 = vmatpush1.msra.mxu0 0.0
        %192 = vmatprep.subr.mxu0 0.0
        %193 = vmatpush1.msra.mxu0 0.0
        %194 = vmatprep.subr.mxu0 0.0
        %195 = vmatpush1.msra.mxu0 0.0
        %196 = vmatprep.subr.mxu0 0.0
        %197 = vmatpush1.msra.mxu0 0.0
        %198 = vmatprep.subr.mxu0 0.0
        %199 = vmatpush1.msra.mxu0 0.0
        %200 = vmatprep.subr.mxu0 0.0
        %201 = vmatpush1.msra.mxu0 0.0
        %202 = vmatprep.subr.mxu0 0.0
        %203 = vmatpush1.msra.mxu0 0.0
        %204 = vmatprep.subr.mxu0 0.0
        %205 = vmatpush1.msra.mxu0 0.0
        %206 = vmatprep.subr.mxu0 0.0
        %207 = vmatpush1.msra.mxu0 0.0
        %208 = vmatprep.subr.mxu0 0.0
        %209 = vmatpush1.msra.mxu0 0.0
        %210 = vmatprep.subr.mxu0 0.0
        %211 = vmatpush1.msra.mxu0 0.0
        %212 = vmatprep.subr.mxu0 0.0
        %213 = vmatpush1.msra.mxu0 0.0
        %214 = vmatprep.subr.mxu0 0.0
        %215 = vmatpush1.msra.mxu0 0.0
        %216 = vmatprep.subr.mxu0 0.0
        %217 = vmatpush1.msra.mxu0 0.0
        %218 = vmatprep.subr.mxu0 0.0
        %219 = vmatpush1.msra.mxu0 0.0
        %220 = vmatprep.subr.mxu0 0.0
        %221 = vmatpush1.msra.mxu0 0.0
        %222 = vmatprep.subr.mxu0 0.0
        %223 = vmatpush1.msra.mxu0 0.0
        %224 = vmatprep.subr.mxu0 0.0
        %225 = vmatpush1.msra.mxu0 0.0
        %226 = vmatprep.subr.mxu0 0.0
        %227 = vmatpush1.msra.mxu0 0.0
        %228 = vmatprep.subr.mxu0 0.0
        %229 = vmatpush1.msra.mxu0 0.0
        %230 = vmatprep.subr.mxu0 0.0
        %231 = vmatpush1.msra.mxu0 0.0
        %232 = vmatprep.subr.mxu0 0.0
        %233 = vmatpush1.msra.mxu0 0.0
        %234 = vmatprep.subr.mxu0 0.0
        %235 = vmatpush1.msra.mxu0 0.0
        %236 = vmatprep.subr.mxu0 0.0
        %237 = vmatpush1.msra.mxu0 0.0
        %238 = vmatprep.mubr.f32.mxu0 0.0
        %239 = vmatmul.mubr.f32.gmra.mrb[0].mxu0 %v165
        %v240 = vpop.f32.mrb[0].mxu0
        %v241 = vadd.f32 0.0, %v240
        %v242 = vpop.f32.mrb[0].mxu0
        %v243 = vadd.f32 0.0, %v242
        %244 = vdwg.mxu0
        %245 = vmatprep.subr.mxu0 0.0
        %246 = vmatpush1.msra.mxu0 %v172
        %247 = vmatprep.subr.mxu0 0.0
        %248 = vmatpush1.msra.mxu0 0.0
        %249 = vmatprep.subr.mxu0 0.0
        %250 = vmatpush1.msra.mxu0 0.0
        %251 = vmatprep.subr.mxu0 0.0
        %252 = vmatpush1.msra.mxu0 0.0
        %253 = vmatprep.subr.mxu0 0.0
        %254 = vmatpush1.msra.mxu0 0.0
        %255 = vmatprep.subr.mxu0 0.0
        %256 = vmatpush1.msra.mxu0 0.0
        %257 = vmatprep.subr.mxu0 0.0
        %258 = vmatpush1.msra.mxu0 0.0
        %259 = vmatprep.subr.mxu0 0.0
        %260 = vmatpush1.msra.mxu0 0.0
        %261 = vmatprep.subr.mxu0 0.0
        %262 = vmatpush1.msra.mxu0 0.0
        %263 = vmatprep.subr.mxu0 0.0
        %264 = vmatpush1.msra.mxu0 0.0
        %265 = vmatprep.subr.mxu0 0.0
        %266 = vmatpush1.msra.mxu0 0.0
        %267 = vmatprep.subr.mxu0 0.0
        %268 = vmatpush1.msra.mxu0 0.0
        %269 = vmatprep.subr.mxu0 0.0
        %270 = vmatpush1.msra.mxu0 0.0
        %271 = vmatprep.subr.mxu0 0.0
        %272 = vmatpush1.msra.mxu0 0.0
        %273 = vmatprep.subr.mxu0 0.0
        %274 = vmatpush1.msra.mxu0 0.0
        %275 = vmatprep.subr.mxu0 0.0
        %276 = vmatpush1.msra.mxu0 0.0
        %277 = vmatprep.subr.mxu0 0.0
        %278 = vmatpush1.msra.mxu0 0.0
        %279 = vmatprep.subr.mxu0 0.0
        %280 = vmatpush1.msra.mxu0 0.0
        %281 = vmatprep.subr.mxu0 0.0
        %282 = vmatpush1.msra.mxu0 0.0
        %283 = vmatprep.subr.mxu0 0.0
        %284 = vmatpush1.msra.mxu0 0.0
        %285 = vmatprep.subr.mxu0 0.0
        %286 = vmatpush1.msra.mxu0 0.0
        %287 = vmatprep.subr.mxu0 0.0
        %288 = vmatpush1.msra.mxu0 0.0
        %289 = vmatprep.subr.mxu0 0.0
        %290 = vmatpush1.msra.mxu0 0.0
        %291 = vmatprep.subr.mxu0 0.0
        %292 = vmatpush1.msra.mxu0 0.0
        %293 = vmatprep.subr.mxu0 0.0
        %294 = vmatpush1.msra.mxu0 0.0
        %295 = vmatprep.subr.mxu0 0.0
        %296 = vmatpush1.msra.mxu0 0.0
        %297 = vmatprep.subr.mxu0 0.0
        %298 = vmatpush1.msra.mxu0 0.0
        %299 = vmatprep.subr.mxu0 0.0
        %300 = vmatpush1.msra.mxu0 0.0
        %301 = vmatprep.subr.mxu0 0.0
        %302 = vmatpush1.msra.mxu0 0.0
        %303 = vmatprep.subr.mxu0 0.0
        %304 = vmatpush1.msra.mxu0 0.0
        %305 = vmatprep.subr.mxu0 0.0
        %306 = vmatpush1.msra.mxu0 0.0
        %307 = vmatprep.subr.mxu0 0.0
        %308 = vmatpush1.msra.mxu0 0.0
        %309 = vmatprep.mubr.f32.mxu0 0.0
        %310 = vmatmul.mubr.f32.gmra.mrb[0].mxu0 %v165
        %v311 = vpop.f32.mrb[0].mxu0
        %v312 = vadd.f32 0.0, %v311
        %v313 = vpop.f32.mrb[0].mxu0
        %314 = vdwg.mxu0
        %v316 = vsel %vm163, %v144, 0
        %v318 = vsel %vm167, %v142, 0
        %v320 = vsel %vm167, %v149, 0
        %v322 = vsel %vm167, %v143, 0
        %324 = vmatprep.subr.mxu0 %v320
        %325 = vmatpush1.msra.mxu0 %v318
        %326 = vmatprep.subr.mxu0 0.0
        %327 = vmatpush1.msra.mxu0 0.0
        %328 = vmatprep.subr.mxu0 0.0
        %329 = vmatpush1.msra.mxu0 0.0
        %330 = vmatprep.subr.mxu0 0.0
        %331 = vmatpush1.msra.mxu0 0.0
        %332 = vmatprep.subr.mxu0 0.0
        %333 = vmatpush1.msra.mxu0 0.0
        %334 = vmatprep.subr.mxu0 0.0
        %335 = vmatpush1.msra.mxu0 0.0
        %336 = vmatprep.subr.mxu0 0.0
        %337 = vmatpush1.msra.mxu0 0.0
        %338 = vmatprep.subr.mxu0 0.0
        %339 = vmatpush1.msra.mxu0 0.0
        %340 = vmatprep.subr.mxu0 0.0
        %341 = vmatpush1.msra.mxu0 0.0
        %342 = vmatprep.subr.mxu0 0.0
        %343 = vmatpush1.msra.mxu0 0.0
        %344 = vmatprep.subr.mxu0 0.0
        %345 = vmatpush1.msra.mxu0 0.0
        %346 = vmatprep.subr.mxu0 0.0
        %347 = vmatpush1.msra.mxu0 0.0
        %348 = vmatprep.subr.mxu0 0.0
        %349 = vmatpush1.msra.mxu0 0.0
        %350 = vmatprep.subr.mxu0 0.0
        %351 = vmatpush1.msra.mxu0 0.0
        %352 = vmatprep.subr.mxu0 0.0
        %353 = vmatpush1.msra.mxu0 0.0
        %354 = vmatprep.subr.mxu0 0.0
        %355 = vmatpush1.msra.mxu0 0.0
        %356 = vmatprep.subr.mxu0 0.0
        %357 = vmatpush1.msra.mxu0 0.0
        %358 = vmatprep.subr.mxu0 0.0
        %359 = vmatpush1.msra.mxu0 0.0
        %360 = vmatprep.subr.mxu0 0.0
        %361 = vmatpush1.msra.mxu0 0.0
        %362 = vmatprep.subr.mxu0 0.0
        %363 = vmatpush1.msra.mxu0 0.0
        %364 = vmatprep.subr.mxu0 0.0
        %365 = vmatpush1.msra.mxu0 0.0
        %366 = vmatprep.subr.mxu0 0.0
        %367 = vmatpush1.msra.mxu0 0.0
        %368 = vmatprep.subr.mxu0 0.0
        %369 = vmatpush1.msra.mxu0 0.0
        %370 = vmatprep.subr.mxu0 0.0
        %371 = vmatpush1.msra.mxu0 0.0
        %372 = vmatprep.subr.mxu0 0.0
        %373 = vmatpush1.msra.mxu0 0.0
        %374 = vmatprep.subr.mxu0 0.0
        %375 = vmatpush1.msra.mxu0 0.0
        %376 = vmatprep.subr.mxu0 0.0
        %377 = vmatpush1.msra.mxu0 0.0
        %378 = vmatprep.subr.mxu0 0.0
        %379 = vmatpush1.msra.mxu0 0.0
        %380 = vmatprep.subr.mxu0 0.0
        %381 = vmatpush1.msra.mxu0 0.0
        %382 = vmatprep.subr.mxu0 0.0
        %383 = vmatpush1.msra.mxu0 0.0
        %384 = vmatprep.subr.mxu0 0.0
        %385 = vmatpush1.msra.mxu0 0.0
        %386 = vmatprep.subr.mxu0 0.0
        %387 = vmatpush1.msra.mxu0 0.0
        %388 = vmatprep.mubr.f32.mxu0 0.0
        %389 = vmatmul.mubr.f32.gmra.mrb[0].mxu0 %v316
        %v390 = vpop.f32.mrb[0].mxu0
        %v391 = vadd.f32 %v241, %v390
        %v392 = vpop.f32.mrb[0].mxu0
        %v393 = vadd.f32 %v243, %v392
        %394 = vdwg.mxu0
        %395 = vmatprep.subr.mxu0 0.0
        %396 = vmatpush1.msra.mxu0 %v322
        %397 = vmatprep.subr.mxu0 0.0
        %398 = vmatpush1.msra.mxu0 0.0
        %399 = vmatprep.subr.mxu0 0.0
        %400 = vmatpush1.msra.mxu0 0.0
        %401 = vmatprep.subr.mxu0 0.0
        %402 = vmatpush1.msra.mxu0 0.0
        %403 = vmatprep.subr.mxu0 0.0
        %404 = vmatpush1.msra.mxu0 0.0
        %405 = vmatprep.subr.mxu0 0.0
        %406 = vmatpush1.msra.mxu0 0.0
        %407 = vmatprep.subr.mxu0 0.0
        %408 = vmatpush1.msra.mxu0 0.0
        %409 = vmatprep.subr.mxu0 0.0
        %410 = vmatpush1.msra.mxu0 0.0
        %411 = vmatprep.subr.mxu0 0.0
        %412 = vmatpush1.msra.mxu0 0.0
        %413 = vmatprep.subr.mxu0 0.0
        %414 = vmatpush1.msra.mxu0 0.0
        %415 = vmatprep.subr.mxu0 0.0
        %416 = vmatpush1.msra.mxu0 0.0
        %417 = vmatprep.subr.mxu0 0.0
        %418 = vmatpush1.msra.mxu0 0.0
        %419 = vmatprep.subr.mxu0 0.0
        %420 = vmatpush1.msra.mxu0 0.0
        %421 = vmatprep.subr.mxu0 0.0
        %422 = vmatpush1.msra.mxu0 0.0
        %423 = vmatprep.subr.mxu0 0.0
        %424 = vmatpush1.msra.mxu0 0.0
        %425 = vmatprep.subr.mxu0 0.0
        %426 = vmatpush1.msra.mxu0 0.0
        %427 = vmatprep.subr.mxu0 0.0
        %428 = vmatpush1.msra.mxu0 0.0
        %429 = vmatprep.subr.mxu0 0.0
        %430 = vmatpush1.msra.mxu0 0.0
        %431 = vmatprep.subr.mxu0 0.0
        %432 = vmatpush1.msra.mxu0 0.0
        %433 = vmatprep.subr.mxu0 0.0
        %434 = vmatpush1.msra.mxu0 0.0
        %435 = vmatprep.subr.mxu0 0.0
        %436 = vmatpush1.msra.mxu0 0.0
        %437 = vmatprep.subr.mxu0 0.0
        %438 = vmatpush1.msra.mxu0 0.0
        %439 = vmatprep.subr.mxu0 0.0
        %440 = vmatpush1.msra.mxu0 0.0
        %441 = vmatprep.subr.mxu0 0.0
        %442 = vmatpush1.msra.mxu0 0.0
        %443 = vmatprep.subr.mxu0 0.0
        %444 = vmatpush1.msra.mxu0 0.0
        %445 = vmatprep.subr.mxu0 0.0
        %446 = vmatpush1.msra.mxu0 0.0
        %447 = vmatprep.subr.mxu0 0.0
        %448 = vmatpush1.msra.mxu0 0.0
        %449 = vmatprep.subr.mxu0 0.0
        %450 = vmatpush1.msra.mxu0 0.0
        %451 = vmatprep.subr.mxu0 0.0
        %452 = vmatpush1.msra.mxu0 0.0
        %453 = vmatprep.subr.mxu0 0.0
        %454 = vmatpush1.msra.mxu0 0.0
        %455 = vmatprep.subr.mxu0 0.0
        %456 = vmatpush1.msra.mxu0 0.0
        %457 = vmatprep.subr.mxu0 0.0
        %458 = vmatpush1.msra.mxu0 0.0
        %459 = vmatprep.mubr.f32.mxu0 0.0
        %460 = vmatmul.mubr.f32.gmra.mrb[0].mxu0 %v316
        %v461 = vpop.f32.mrb[0].mxu0
        %v462 = vadd.f32 %v312, %v461
        %v463 = vpop.f32.mrb[0].mxu0
        %464 = vdwg.mxu0
        %s465 = scalar_lea.vmem %s1, 8
        %v466 = vld [vmem:[%s465] sm:$0xf]
        %467 = vrot.lane.b32.xlu0 %v142, 126
        %v468 = vpop.permute.xlu0 %467
        %469 = vrot.lane.b32.xlu0 %v149, 126
        %v470 = vpop.permute.xlu0 %469
        %471 = vrot.lane.b32.xlu0 %v143, 126
        %v472 = vpop.permute.xlu0 %471
        %473 = vrot.lane.b32.xlu0 %v150, 126
        %v474 = vpop.permute.xlu0 %473
        %vm475 = vcmask 1031168
        %v476 = vsel %vm475, %v468, %v470
        %v477 = vsel %vm475, %v470, %v472
        %v478 = vsel %vm475, %v472, %v474
        %v480 = vsel %vm163, %v466, 0
        %v482 = vsel %vm167, %v476, 0
        %v484 = vsel %vm167, %v477, 0
        %v486 = vsel %vm167, %v478, 0
        %488 = vmatprep.subr.mxu0 %v484
        %489 = vmatpush1.msra.mxu0 %v482
        %490 = vmatprep.subr.mxu0 0.0
        %491 = vmatpush1.msra.mxu0 0.0
        %492 = vmatprep.subr.mxu0 0.0
        %493 = vmatpush1.msra.mxu0 0.0
        %494 = vmatprep.subr.mxu0 0.0
        %495 = vmatpush1.msra.mxu0 0.0
        %496 = vmatprep.subr.mxu0 0.0
        %497 = vmatpush1.msra.mxu0 0.0
        %498 = vmatprep.subr.mxu0 0.0
        %499 = vmatpush1.msra.mxu0 0.0
        %500 = vmatprep.subr.mxu0 0.0
        %501 = vmatpush1.msra.mxu0 0.0
        %502 = vmatprep.subr.mxu0 0.0
        %503 = vmatpush1.msra.mxu0 0.0
        %504 = vmatprep.subr.mxu0 0.0
        %505 = vmatpush1.msra.mxu0 0.0
        %506 = vmatprep.subr.mxu0 0.0
        %507 = vmatpush1.msra.mxu0 0.0
        %508 = vmatprep.subr.mxu0 0.0
        %509 = vmatpush1.msra.mxu0 0.0
        %510 = vmatprep.subr.mxu0 0.0
        %511 = vmatpush1.msra.mxu0 0.0
        %512 = vmatprep.subr.mxu0 0.0
        %513 = vmatpush1.msra.mxu0 0.0
        %514 = vmatprep.subr.mxu0 0.0
        %515 = vmatpush1.msra.mxu0 0.0
        %516 = vmatprep.subr.mxu0 0.0
        %517 = vmatpush1.msra.mxu0 0.0
        %518 = vmatprep.subr.mxu0 0.0
        %519 = vmatpush1.msra.mxu0 0.0
        %520 = vmatprep.subr.mxu0 0.0
        %521 = vmatpush1.msra.mxu0 0.0
        %522 = vmatprep.subr.mxu0 0.0
        %523 = vmatpush1.msra.mxu0 0.0
        %524 = vmatprep.subr.mxu0 0.0
        %525 = vmatpush1.msra.mxu0 0.0
        %526 = vmatprep.subr.mxu0 0.0
        %527 = vmatpush1.msra.mxu0 0.0
        %528 = vmatprep.subr.mxu0 0.0
        %529 = vmatpush1.msra.mxu0 0.0
        %530 = vmatprep.subr.mxu0 0.0
        %531 = vmatpush1.msra.mxu0 0.0
        %532 = vmatprep.subr.mxu0 0.0
        %533 = vmatpush1.msra.mxu0 0.0
        %534 = vmatprep.subr.mxu0 0.0
        %535 = vmatpush1.msra.mxu0 0.0
        %536 = vmatprep.subr.mxu0 0.0
        %537 = vmatpush1.msra.mxu0 0.0
        %538 = vmatprep.subr.mxu0 0.0
        %539 = vmatpush1.msra.mxu0 0.0
        %540 = vmatprep.subr.mxu0 0.0
        %541 = vmatpush1.msra.mxu0 0.0
        %542 = vmatprep.subr.mxu0 0.0
        %543 = vmatpush1.msra.mxu0 0.0
        %544 = vmatprep.subr.mxu0 0.0
        %545 = vmatpush1.msra.mxu0 0.0
        %546 = vmatprep.subr.mxu0 0.0
        %547 = vmatpush1.msra.mxu0 0.0
        %548 = vmatprep.subr.mxu0 0.0
        %549 = vmatpush1.msra.mxu0 0.0
        %550 = vmatprep.subr.mxu0 0.0
        %551 = vmatpush1.msra.mxu0 0.0
        %552 = vmatprep.mubr.f32.mxu0 0.0
        %553 = vmatmul.mubr.f32.gmra.mrb[0].mxu0 %v480
        %v554 = vpop.f32.mrb[0].mxu0
        %v555 = vadd.f32 0.0, %v554
        %v556 = vpop.f32.mrb[0].mxu0
        %v557 = vadd.f32 0.0, %v556
        %558 = vdwg.mxu0
        %559 = vmatprep.subr.mxu0 0.0
        %560 = vmatpush1.msra.mxu0 %v486
        %561 = vmatprep.subr.mxu0 0.0
        %562 = vmatpush1.msra.mxu0 0.0
        %563 = vmatprep.subr.mxu0 0.0
        %564 = vmatpush1.msra.mxu0 0.0
        %565 = vmatprep.subr.mxu0 0.0
        %566 = vmatpush1.msra.mxu0 0.0
        %567 = vmatprep.subr.mxu0 0.0
        %568 = vmatpush1.msra.mxu0 0.0
        %569 = vmatprep.subr.mxu0 0.0
        %570 = vmatpush1.msra.mxu0 0.0
        %571 = vmatprep.subr.mxu0 0.0
        %572 = vmatpush1.msra.mxu0 0.0
        %573 = vmatprep.subr.mxu0 0.0
        %574 = vmatpush1.msra.mxu0 0.0
        %575 = vmatprep.subr.mxu0 0.0
        %576 = vmatpush1.msra.mxu0 0.0
        %577 = vmatprep.subr.mxu0 0.0
        %578 = vmatpush1.msra.mxu0 0.0
        %579 = vmatprep.subr.mxu0 0.0
        %580 = vmatpush1.msra.mxu0 0.0
        %581 = vmatprep.subr.mxu0 0.0
        %582 = vmatpush1.msra.mxu0 0.0
        %583 = vmatprep.subr.mxu0 0.0
        %584 = vmatpush1.msra.mxu0 0.0
        %585 = vmatprep.subr.mxu0 0.0
        %586 = vmatpush1.msra.mxu0 0.0
        %587 = vmatprep.subr.mxu0 0.0
        %588 = vmatpush1.msra.mxu0 0.0
        %589 = vmatprep.subr.mxu0 0.0
        %590 = vmatpush1.msra.mxu0 0.0
        %591 = vmatprep.subr.mxu0 0.0
        %592 = vmatpush1.msra.mxu0 0.0
        %593 = vmatprep.subr.mxu0 0.0
        %594 = vmatpush1.msra.mxu0 0.0
        %595 = vmatprep.subr.mxu0 0.0
        %596 = vmatpush1.msra.mxu0 0.0
        %597 = vmatprep.subr.mxu0 0.0
        %598 = vmatpush1.msra.mxu0 0.0
        %599 = vmatprep.subr.mxu0 0.0
        %600 = vmatpush1.msra.mxu0 0.0
        %601 = vmatprep.subr.mxu0 0.0
        %602 = vmatpush1.msra.mxu0 0.0
        %603 = vmatprep.subr.mxu0 0.0
        %604 = vmatpush1.msra.mxu0 0.0
        %605 = vmatprep.subr.mxu0 0.0
        %606 = vmatpush1.msra.mxu0 0.0
        %607 = vmatprep.subr.mxu0 0.0
        %608 = vmatpush1.msra.mxu0 0.0
        %609 = vmatprep.subr.mxu0 0.0
        %610 = vmatpush1.msra.mxu0 0.0
        %611 = vmatprep.subr.mxu0 0.0
        %612 = vmatpush1.msra.mxu0 0.0
        %613 = vmatprep.subr.mxu0 0.0
        %614 = vmatpush1.msra.mxu0 0.0
        %615 = vmatprep.subr.mxu0 0.0
        %616 = vmatpush1.msra.mxu0 0.0
        %617 = vmatprep.subr.mxu0 0.0
        %618 = vmatpush1.msra.mxu0 0.0
        %619 = vmatprep.subr.mxu0 0.0
        %620 = vmatpush1.msra.mxu0 0.0
        %621 = vmatprep.subr.mxu0 0.0
        %622 = vmatpush1.msra.mxu0 0.0
        %623 = vmatprep.mubr.f32.mxu0 0.0
        %624 = vmatmul.mubr.f32.gmra.mrb[0].mxu0 %v480
        %v625 = vpop.f32.mrb[0].mxu0
        %v626 = vadd.f32 0.0, %v625
        %v627 = vpop.f32.mrb[0].mxu0
        %628 = vdwg.mxu0
        %v629 = vadd.f32 %v391, %v555
        %v630 = vadd.f32 %v393, %v557
        %v631 = vadd.f32 %v462, %v626
        %s632 = scalar_lea.vmem %s1, 12
        %v633 = vld [vmem:[%s632] sm:$0xf]
        %634 = vrot.lane.b32.xlu0 %v142, 110
        %v635 = vpop.permute.xlu0 %634
        %636 = vrot.lane.b32.xlu0 %v149, 110
        %v637 = vpop.permute.xlu0 %636
        %638 = vrot.lane.b32.xlu0 %v143, 110
        %v639 = vpop.permute.xlu0 %638
        %640 = vrot.lane.b32.xlu0 %v150, 110
        %v641 = vpop.permute.xlu0 %640
        %vm642 = vcmask 900096
        %v643 = vsel %vm642, %v635, %v637
        %v644 = vsel %vm642, %v637, %v639
        %v645 = vsel %vm642, %v639, %v641
        %v647 = vsel %vm163, %v633, 0
        %v649 = vsel %vm167, %v643, 0
        %v651 = vsel %vm167, %v644, 0
        %v653 = vsel %vm167, %v645, 0
        %655 = vmatprep.subr.mxu0 %v651
        %656 = vmatpush1.msra.mxu0 %v649
        %657 = vmatprep.subr.mxu0 0.0
        %658 = vmatpush1.msra.mxu0 0.0
        %659 = vmatprep.subr.mxu0 0.0
        %660 = vmatpush1.msra.mxu0 0.0
        %661 = vmatprep.subr.mxu0 0.0
        %662 = vmatpush1.msra.mxu0 0.0
        %663 = vmatprep.subr.mxu0 0.0
        %664 = vmatpush1.msra.mxu0 0.0
        %665 = vmatprep.subr.mxu0 0.0
        %666 = vmatpush1.msra.mxu0 0.0
        %667 = vmatprep.subr.mxu0 0.0
        %668 = vmatpush1.msra.mxu0 0.0
        %669 = vmatprep.subr.mxu0 0.0
        %670 = vmatpush1.msra.mxu0 0.0
        %671 = vmatprep.subr.mxu0 0.0
        %672 = vmatpush1.msra.mxu0 0.0
        %673 = vmatprep.subr.mxu0 0.0
        %674 = vmatpush1.msra.mxu0 0.0
        %675 = vmatprep.subr.mxu0 0.0
        %676 = vmatpush1.msra.mxu0 0.0
        %677 = vmatprep.subr.mxu0 0.0
        %678 = vmatpush1.msra.mxu0 0.0
        %679 = vmatprep.subr.mxu0 0.0
        %680 = vmatpush1.msra.mxu0 0.0
        %681 = vmatprep.subr.mxu0 0.0
        %682 = vmatpush1.msra.mxu0 0.0
        %683 = vmatprep.subr.mxu0 0.0
        %684 = vmatpush1.msra.mxu0 0.0
        %685 = vmatprep.subr.mxu0 0.0
        %686 = vmatpush1.msra.mxu0 0.0
        %687 = vmatprep.subr.mxu0 0.0
        %688 = vmatpush1.msra.mxu0 0.0
        %689 = vmatprep.subr.mxu0 0.0
        %690 = vmatpush1.msra.mxu0 0.0
        %691 = vmatprep.subr.mxu0 0.0
        %692 = vmatpush1.msra.mxu0 0.0
        %693 = vmatprep.subr.mxu0 0.0
        %694 = vmatpush1.msra.mxu0 0.0
        %695 = vmatprep.subr.mxu0 0.0
        %696 = vmatpush1.msra.mxu0 0.0
        %697 = vmatprep.subr.mxu0 0.0
        %698 = vmatpush1.msra.mxu0 0.0
        %699 = vmatprep.subr.mxu0 0.0
        %700 = vmatpush1.msra.mxu0 0.0
        %701 = vmatprep.subr.mxu0 0.0
        %702 = vmatpush1.msra.mxu0 0.0
        %703 = vmatprep.subr.mxu0 0.0
        %704 = vmatpush1.msra.mxu0 0.0
        %705 = vmatprep.subr.mxu0 0.0
        %706 = vmatpush1.msra.mxu0 0.0
        %707 = vmatprep.subr.mxu0 0.0
        %708 = vmatpush1.msra.mxu0 0.0
        %709 = vmatprep.subr.mxu0 0.0
        %710 = vmatpush1.msra.mxu0 0.0
        %711 = vmatprep.subr.mxu0 0.0
        %712 = vmatpush1.msra.mxu0 0.0
        %713 = vmatprep.subr.mxu0 0.0
        %714 = vmatpush1.msra.mxu0 0.0
        %715 = vmatprep.subr.mxu0 0.0
        %716 = vmatpush1.msra.mxu0 0.0
        %717 = vmatprep.subr.mxu0 0.0
        %718 = vmatpush1.msra.mxu0 0.0
        %719 = vmatprep.mubr.f32.mxu0 0.0
        %720 = vmatmul.mubr.f32.gmra.mrb[0].mxu0 %v647
        %v721 = vpop.f32.mrb[0].mxu0
        %v722 = vadd.f32 0.0, %v721
        %v723 = vpop.f32.mrb[0].mxu0
        %v724 = vadd.f32 0.0, %v723
        %725 = vdwg.mxu0
        %726 = vmatprep.subr.mxu0 0.0
        %727 = vmatpush1.msra.mxu0 %v653
        %728 = vmatprep.subr.mxu0 0.0
        %729 = vmatpush1.msra.mxu0 0.0
        %730 = vmatprep.subr.mxu0 0.0
        %731 = vmatpush1.msra.mxu0 0.0
        %732 = vmatprep.subr.mxu0 0.0
        %733 = vmatpush1.msra.mxu0 0.0
        %734 = vmatprep.subr.mxu0 0.0
        %735 = vmatpush1.msra.mxu0 0.0
        %736 = vmatprep.subr.mxu0 0.0
        %737 = vmatpush1.msra.mxu0 0.0
        %738 = vmatprep.subr.mxu0 0.0
        %739 = vmatpush1.msra.mxu0 0.0
        %740 = vmatprep.subr.mxu0 0.0
        %741 = vmatpush1.msra.mxu0 0.0
        %742 = vmatprep.subr.mxu0 0.0
        %743 = vmatpush1.msra.mxu0 0.0
        %744 = vmatprep.subr.mxu0 0.0
        %745 = vmatpush1.msra.mxu0 0.0
        %746 = vmatprep.subr.mxu0 0.0
        %747 = vmatpush1.msra.mxu0 0.0
        %748 = vmatprep.subr.mxu0 0.0
        %749 = vmatpush1.msra.mxu0 0.0
        %750 = vmatprep.subr.mxu0 0.0
        %751 = vmatpush1.msra.mxu0 0.0
        %752 = vmatprep.subr.mxu0 0.0
        %753 = vmatpush1.msra.mxu0 0.0
        %754 = vmatprep.subr.mxu0 0.0
        %755 = vmatpush1.msra.mxu0 0.0
        %756 = vmatprep.subr.mxu0 0.0
        %757 = vmatpush1.msra.mxu0 0.0
        %758 = vmatprep.subr.mxu0 0.0
        %759 = vmatpush1.msra.mxu0 0.0
        %760 = vmatprep.subr.mxu0 0.0
        %761 = vmatpush1.msra.mxu0 0.0
        %762 = vmatprep.subr.mxu0 0.0
        %763 = vmatpush1.msra.mxu0 0.0
        %764 = vmatprep.subr.mxu0 0.0
        %765 = vmatpush1.msra.mxu0 0.0
        %766 = vmatprep.subr.mxu0 0.0
        %767 = vmatpush1.msra.mxu0 0.0
        %768 = vmatprep.subr.mxu0 0.0
        %769 = vmatpush1.msra.mxu0 0.0
        %770 = vmatprep.subr.mxu0 0.0
        %771 = vmatpush1.msra.mxu0 0.0
        %772 = vmatprep.subr.mxu0 0.0
        %773 = vmatpush1.msra.mxu0 0.0
        %774 = vmatprep.subr.mxu0 0.0
        %775 = vmatpush1.msra.mxu0 0.0
        %776 = vmatprep.subr.mxu0 0.0
        %777 = vmatpush1.msra.mxu0 0.0
        %778 = vmatprep.subr.mxu0 0.0
        %779 = vmatpush1.msra.mxu0 0.0
        %780 = vmatprep.subr.mxu0 0.0
        %781 = vmatpush1.msra.mxu0 0.0
        %782 = vmatprep.subr.mxu0 0.0
        %783 = vmatpush1.msra.mxu0 0.0
        %784 = vmatprep.subr.mxu0 0.0
        %785 = vmatpush1.msra.mxu0 0.0
        %786 = vmatprep.subr.mxu0 0.0
        %787 = vmatpush1.msra.mxu0 0.0
        %788 = vmatprep.subr.mxu0 0.0
        %789 = vmatpush1.msra.mxu0 0.0
        %790 = vmatprep.mubr.f32.mxu0 0.0
        %791 = vmatmul.mubr.f32.gmra.mrb[0].mxu0 %v647
        %v792 = vpop.f32.mrb[0].mxu0
        %v793 = vadd.f32 0.0, %v792
        %v794 = vpop.f32.mrb[0].mxu0
        %795 = vdwg.mxu0
        %v796 = vadd.f32 %v629, %v722
        %v797 = vadd.f32 %v630, %v724
        %v798 = vadd.f32 %v631, %v793
        %s799 = scalar_lea.vmem %s1, 16
        %v800 = vld [vmem:[%s799] sm:$0xf]
        %801 = vrot.lane.b32.xlu0 %v142, 109
        %v802 = vpop.permute.xlu0 %801
        %803 = vrot.lane.b32.xlu0 %v149, 109
        %v804 = vpop.permute.xlu0 %803
        %805 = vrot.lane.b32.xlu0 %v143, 109
        %v806 = vpop.permute.xlu0 %805
        %807 = vrot.lane.b32.xlu0 %v150, 109
        %v808 = vpop.permute.xlu0 %807
        %vm809 = vcmask 891904
        %v810 = vsel %vm809, %v802, %v804
        %v811 = vsel %vm809, %v804, %v806
        %v812 = vsel %vm809, %v806, %v808
        %v814 = vsel %vm163, %v800, 0
        %v816 = vsel %vm167, %v810, 0
        %v818 = vsel %vm167, %v811, 0
        %v820 = vsel %vm167, %v812, 0
        %822 = vmatprep.subr.mxu0 %v818
        %823 = vmatpush1.msra.mxu0 %v816
        %824 = vmatprep.subr.mxu0 0.0
        %825 = vmatpush1.msra.mxu0 0.0
        %826 = vmatprep.subr.mxu0 0.0
        %827 = vmatpush1.msra.mxu0 0.0
        %828 = vmatprep.subr.mxu0 0.0
        %829 = vmatpush1.msra.mxu0 0.0
        %830 = vmatprep.subr.mxu0 0.0
        %831 = vmatpush1.msra.mxu0 0.0
        %832 = vmatprep.subr.mxu0 0.0
        %833 = vmatpush1.msra.mxu0 0.0
        %834 = vmatprep.subr.mxu0 0.0
        %835 = vmatpush1.msra.mxu0 0.0
        %836 = vmatprep.subr.mxu0 0.0
        %837 = vmatpush1.msra.mxu0 0.0
        %838 = vmatprep.subr.mxu0 0.0
        %839 = vmatpush1.msra.mxu0 0.0
        %840 = vmatprep.subr.mxu0 0.0
        %841 = vmatpush1.msra.mxu0 0.0
        %842 = vmatprep.subr.mxu0 0.0
        %843 = vmatpush1.msra.mxu0 0.0
        %844 = vmatprep.subr.mxu0 0.0
        %845 = vmatpush1.msra.mxu0 0.0
        %846 = vmatprep.subr.mxu0 0.0
        %847 = vmatpush1.msra.mxu0 0.0
        %848 = vmatprep.subr.mxu0 0.0
        %849 = vmatpush1.msra.mxu0 0.0
        %850 = vmatprep.subr.mxu0 0.0
        %851 = vmatpush1.msra.mxu0 0.0
        %852 = vmatprep.subr.mxu0 0.0
        %853 = vmatpush1.msra.mxu0 0.0
        %854 = vmatprep.subr.mxu0 0.0
        %855 = vmatpush1.msra.mxu0 0.0
        %856 = vmatprep.subr.mxu0 0.0
        %857 = vmatpush1.msra.mxu0 0.0
        %858 = vmatprep.subr.mxu0 0.0
        %859 = vmatpush1.msra.mxu0 0.0
        %860 = vmatprep.subr.mxu0 0.0
        %861 = vmatpush1.msra.mxu0 0.0
        %862 = vmatprep.subr.mxu0 0.0
        %863 = vmatpush1.msra.mxu0 0.0
        %864 = vmatprep.subr.mxu0 0.0
        %865 = vmatpush1.msra.mxu0 0.0
        %866 = vmatprep.subr.mxu0 0.0
        %867 = vmatpush1.msra.mxu0 0.0
        %868 = vmatprep.subr.mxu0 0.0
        %869 = vmatpush1.msra.mxu0 0.0
        %870 = vmatprep.subr.mxu0 0.0
        %871 = vmatpush1.msra.mxu0 0.0
        %872 = vmatprep.subr.mxu0 0.0
        %873 = vmatpush1.msra.mxu0 0.0
        %874 = vmatprep.subr.mxu0 0.0
        %875 = vmatpush1.msra.mxu0 0.0
        %876 = vmatprep.subr.mxu0 0.0
        %877 = vmatpush1.msra.mxu0 0.0
        %878 = vmatprep.subr.mxu0 0.0
        %879 = vmatpush1.msra.mxu0 0.0
        %880 = vmatprep.subr.mxu0 0.0
        %881 = vmatpush1.msra.mxu0 0.0
        %882 = vmatprep.subr.mxu0 0.0
        %883 = vmatpush1.msra.mxu0 0.0
        %884 = vmatprep.subr.mxu0 0.0
        %885 = vmatpush1.msra.mxu0 0.0
        %886 = vmatprep.mubr.f32.mxu0 0.0
        %887 = vmatmul.mubr.f32.gmra.mrb[0].mxu0 %v814
        %v888 = vpop.f32.mrb[0].mxu0
        %v889 = vadd.f32 0.0, %v888
        %v890 = vpop.f32.mrb[0].mxu0
        %v891 = vadd.f32 0.0, %v890
        %892 = vdwg.mxu0
        %893 = vmatprep.subr.mxu0 0.0
        %894 = vmatpush1.msra.mxu0 %v820
        %895 = vmatprep.subr.mxu0 0.0
        %896 = vmatpush1.msra.mxu0 0.0
        %897 = vmatprep.subr.mxu0 0.0
        %898 = vmatpush1.msra.mxu0 0.0
        %899 = vmatprep.subr.mxu0 0.0
        %900 = vmatpush1.msra.mxu0 0.0
        %901 = vmatprep.subr.mxu0 0.0
        %902 = vmatpush1.msra.mxu0 0.0
        %903 = vmatprep.subr.mxu0 0.0
        %904 = vmatpush1.msra.mxu0 0.0
        %905 = vmatprep.subr.mxu0 0.0
        %906 = vmatpush1.msra.mxu0 0.0
        %907 = vmatprep.subr.mxu0 0.0
        %908 = vmatpush1.msra.mxu0 0.0
        %909 = vmatprep.subr.mxu0 0.0
        %910 = vmatpush1.msra.mxu0 0.0
        %911 = vmatprep.subr.mxu0 0.0
        %912 = vmatpush1.msra.mxu0 0.0
        %913 = vmatprep.subr.mxu0 0.0
        %914 = vmatpush1.msra.mxu0 0.0
        %915 = vmatprep.subr.mxu0 0.0
        %916 = vmatpush1.msra.mxu0 0.0
        %917 = vmatprep.subr.mxu0 0.0
        %918 = vmatpush1.msra.mxu0 0.0
        %919 = vmatprep.subr.mxu0 0.0
        %920 = vmatpush1.msra.mxu0 0.0
        %921 = vmatprep.subr.mxu0 0.0
        %922 = vmatpush1.msra.mxu0 0.0
        %923 = vmatprep.subr.mxu0 0.0
        %924 = vmatpush1.msra.mxu0 0.0
        %925 = vmatprep.subr.mxu0 0.0
        %926 = vmatpush1.msra.mxu0 0.0
        %927 = vmatprep.subr.mxu0 0.0
        %928 = vmatpush1.msra.mxu0 0.0
        %929 = vmatprep.subr.mxu0 0.0
        %930 = vmatpush1.msra.mxu0 0.0
        %931 = vmatprep.subr.mxu0 0.0
        %932 = vmatpush1.msra.mxu0 0.0
        %933 = vmatprep.subr.mxu0 0.0
        %934 = vmatpush1.msra.mxu0 0.0
        %935 = vmatprep.subr.mxu0 0.0
        %936 = vmatpush1.msra.mxu0 0.0
        %937 = vmatprep.subr.mxu0 0.0
        %938 = vmatpush1.msra.mxu0 0.0
        %939 = vmatprep.subr.mxu0 0.0
        %940 = vmatpush1.msra.mxu0 0.0
        %941 = vmatprep.subr.mxu0 0.0
        %942 = vmatpush1.msra.mxu0 0.0
        %943 = vmatprep.subr.mxu0 0.0
        %944 = vmatpush1.msra.mxu0 0.0
        %945 = vmatprep.subr.mxu0 0.0
        %946 = vmatpush1.msra.mxu0 0.0
        %947 = vmatprep.subr.mxu0 0.0
        %948 = vmatpush1.msra.mxu0 0.0
        %949 = vmatprep.subr.mxu0 0.0
        %950 = vmatpush1.msra.mxu0 0.0
        %951 = vmatprep.subr.mxu0 0.0
        %952 = vmatpush1.msra.mxu0 0.0
        %953 = vmatprep.subr.mxu0 0.0
        %954 = vmatpush1.msra.mxu0 0.0
        %955 = vmatprep.subr.mxu0 0.0
        %956 = vmatpush1.msra.mxu0 0.0
        %957 = vmatprep.mubr.f32.mxu0 0.0
        %958 = vmatmul.mubr.f32.gmra.mrb[0].mxu0 %v814
        %v959 = vpop.f32.mrb[0].mxu0
        %v960 = vadd.f32 0.0, %v959
        %v961 = vpop.f32.mrb[0].mxu0
        %962 = vdwg.mxu0
        %v963 = vadd.f32 %v796, %v889
        %v964 = vadd.f32 %v797, %v891
        %v965 = vadd.f32 %v798, %v960
        %s966 = scalar_lea.vmem %s1, 20
        %v967 = vld [vmem:[%s966] sm:$0xf]
        %968 = vrot.lane.b32.xlu0 %v142, 108
        %v969 = vpop.permute.xlu0 %968
        %970 = vrot.lane.b32.xlu0 %v149, 108
        %v971 = vpop.permute.xlu0 %970
        %972 = vrot.lane.b32.xlu0 %v143, 108
        %v973 = vpop.permute.xlu0 %972
        %974 = vrot.lane.b32.xlu0 %v150, 108
        %v975 = vpop.permute.xlu0 %974
        %vm976 = vcmask 883712
        %v977 = vsel %vm976, %v969, %v971
        %v978 = vsel %vm976, %v971, %v973
        %v979 = vsel %vm976, %v973, %v975
        %v981 = vsel %vm163, %v967, 0
        %v983 = vsel %vm167, %v977, 0
        %v985 = vsel %vm167, %v978, 0
        %v987 = vsel %vm167, %v979, 0
        %989 = vmatprep.subr.mxu0 %v985
        %990 = vmatpush1.msra.mxu0 %v983
        %991 = vmatprep.subr.mxu0 0.0
        %992 = vmatpush1.msra.mxu0 0.0
        %993 = vmatprep.subr.mxu0 0.0
        %994 = vmatpush1.msra.mxu0 0.0
        %995 = vmatprep.subr.mxu0 0.0
        %996 = vmatpush1.msra.mxu0 0.0
        %997 = vmatprep.subr.mxu0 0.0
        %998 = vmatpush1.msra.mxu0 0.0
        %999 = vmatprep.subr.mxu0 0.0
        %1000 = vmatpush1.msra.mxu0 0.0
        %1001 = vmatprep.subr.mxu0 0.0
        %1002 = vmatpush1.msra.mxu0 0.0
        %1003 = vmatprep.subr.mxu0 0.0
        %1004 = vmatpush1.msra.mxu0 0.0
        %1005 = vmatprep.subr.mxu0 0.0
        %1006 = vmatpush1.msra.mxu0 0.0
        %1007 = vmatprep.subr.mxu0 0.0
        %1008 = vmatpush1.msra.mxu0 0.0
        %1009 = vmatprep.subr.mxu0 0.0
        %1010 = vmatpush1.msra.mxu0 0.0
        %1011 = vmatprep.subr.mxu0 0.0
        %1012 = vmatpush1.msra.mxu0 0.0
        %1013 = vmatprep.subr.mxu0 0.0
        %1014 = vmatpush1.msra.mxu0 0.0
        %1015 = vmatprep.subr.mxu0 0.0
        %1016 = vmatpush1.msra.mxu0 0.0
        %1017 = vmatprep.subr.mxu0 0.0
        %1018 = vmatpush1.msra.mxu0 0.0
        %1019 = vmatprep.subr.mxu0 0.0
        %1020 = vmatpush1.msra.mxu0 0.0
        %1021 = vmatprep.subr.mxu0 0.0
        %1022 = vmatpush1.msra.mxu0 0.0
        %1023 = vmatprep.subr.mxu0 0.0
        %1024 = vmatpush1.msra.mxu0 0.0
        %1025 = vmatprep.subr.mxu0 0.0
        %1026 = vmatpush1.msra.mxu0 0.0
        %1027 = vmatprep.subr.mxu0 0.0
        %1028 = vmatpush1.msra.mxu0 0.0
        %1029 = vmatprep.subr.mxu0 0.0
        %1030 = vmatpush1.msra.mxu0 0.0
        %1031 = vmatprep.subr.mxu0 0.0
        %1032 = vmatpush1.msra.mxu0 0.0
        %1033 = vmatprep.subr.mxu0 0.0
        %1034 = vmatpush1.msra.mxu0 0.0
        %1035 = vmatprep.subr.mxu0 0.0
        %1036 = vmatpush1.msra.mxu0 0.0
        %1037 = vmatprep.subr.mxu0 0.0
        %1038 = vmatpush1.msra.mxu0 0.0
        %1039 = vmatprep.subr.mxu0 0.0
        %1040 = vmatpush1.msra.mxu0 0.0
        %1041 = vmatprep.subr.mxu0 0.0
        %1042 = vmatpush1.msra.mxu0 0.0
        %1043 = vmatprep.subr.mxu0 0.0
        %1044 = vmatpush1.msra.mxu0 0.0
        %1045 = vmatprep.subr.mxu0 0.0
        %1046 = vmatpush1.msra.mxu0 0.0
        %1047 = vmatprep.subr.mxu0 0.0
        %1048 = vmatpush1.msra.mxu0 0.0
        %1049 = vmatprep.subr.mxu0 0.0
        %1050 = vmatpush1.msra.mxu0 0.0
        %1051 = vmatprep.subr.mxu0 0.0
        %1052 = vmatpush1.msra.mxu0 0.0
        %1053 = vmatprep.mubr.f32.mxu0 0.0
        %1054 = vmatmul.mubr.f32.gmra.mrb[0].mxu0 %v981
        %v1055 = vpop.f32.mrb[0].mxu0
        %v1056 = vadd.f32 0.0, %v1055
        %v1057 = vpop.f32.mrb[0].mxu0
        %v1058 = vadd.f32 0.0, %v1057
        %1059 = vdwg.mxu0
        %1060 = vmatprep.subr.mxu0 0.0
        %1061 = vmatpush1.msra.mxu0 %v987
        %1062 = vmatprep.subr.mxu0 0.0
        %1063 = vmatpush1.msra.mxu0 0.0
        %1064 = vmatprep.subr.mxu0 0.0
        %1065 = vmatpush1.msra.mxu0 0.0
        %1066 = vmatprep.subr.mxu0 0.0
        %1067 = vmatpush1.msra.mxu0 0.0
        %1068 = vmatprep.subr.mxu0 0.0
        %1069 = vmatpush1.msra.mxu0 0.0
        %1070 = vmatprep.subr.mxu0 0.0
        %1071 = vmatpush1.msra.mxu0 0.0
        %1072 = vmatprep.subr.mxu0 0.0
        %1073 = vmatpush1.msra.mxu0 0.0
        %1074 = vmatprep.subr.mxu0 0.0
        %1075 = vmatpush1.msra.mxu0 0.0
        %1076 = vmatprep.subr.mxu0 0.0
        %1077 = vmatpush1.msra.mxu0 0.0
        %1078 = vmatprep.subr.mxu0 0.0
        %1079 = vmatpush1.msra.mxu0 0.0
        %1080 = vmatprep.subr.mxu0 0.0
        %1081 = vmatpush1.msra.mxu0 0.0
        %1082 = vmatprep.subr.mxu0 0.0
        %1083 = vmatpush1.msra.mxu0 0.0
        %1084 = vmatprep.subr.mxu0 0.0
        %1085 = vmatpush1.msra.mxu0 0.0
        %1086 = vmatprep.subr.mxu0 0.0
        %1087 = vmatpush1.msra.mxu0 0.0
        %1088 = vmatprep.subr.mxu0 0.0
        %1089 = vmatpush1.msra.mxu0 0.0
        %1090 = vmatprep.subr.mxu0 0.0
        %1091 = vmatpush1.msra.mxu0 0.0
        %1092 = vmatprep.subr.mxu0 0.0
        %1093 = vmatpush1.msra.mxu0 0.0
        %1094 = vmatprep.subr.mxu0 0.0
        %1095 = vmatpush1.msra.mxu0 0.0
        %1096 = vmatprep.subr.mxu0 0.0
        %1097 = vmatpush1.msra.mxu0 0.0
        %1098 = vmatprep.subr.mxu0 0.0
        %1099 = vmatpush1.msra.mxu0 0.0
        %1100 = vmatprep.subr.mxu0 0.0
        %1101 = vmatpush1.msra.mxu0 0.0
        %1102 = vmatprep.subr.mxu0 0.0
        %1103 = vmatpush1.msra.mxu0 0.0
        %1104 = vmatprep.subr.mxu0 0.0
        %1105 = vmatpush1.msra.mxu0 0.0
        %1106 = vmatprep.subr.mxu0 0.0
        %1107 = vmatpush1.msra.mxu0 0.0
        %1108 = vmatprep.subr.mxu0 0.0
        %1109 = vmatpush1.msra.mxu0 0.0
        %1110 = vmatprep.subr.mxu0 0.0
        %1111 = vmatpush1.msra.mxu0 0.0
        %1112 = vmatprep.subr.mxu0 0.0
        %1113 = vmatpush1.msra.mxu0 0.0
        %1114 = vmatprep.subr.mxu0 0.0
        %1115 = vmatpush1.msra.mxu0 0.0
        %1116 = vmatprep.subr.mxu0 0.0
        %1117 = vmatpush1.msra.mxu0 0.0
        %1118 = vmatprep.subr.mxu0 0.0
        %1119 = vmatpush1.msra.mxu0 0.0
        %1120 = vmatprep.subr.mxu0 0.0
        %1121 = vmatpush1.msra.mxu0 0.0
        %1122 = vmatprep.subr.mxu0 0.0
        %1123 = vmatpush1.msra.mxu0 0.0
        %1124 = vmatprep.mubr.f32.mxu0 0.0
        %1125 = vmatmul.mubr.f32.gmra.mrb[0].mxu0 %v981
        %v1126 = vpop.f32.mrb[0].mxu0
        %v1127 = vadd.f32 0.0, %v1126
        %v1128 = vpop.f32.mrb[0].mxu0
        %1129 = vdwg.mxu0
        %v1130 = vadd.f32 %v963, %v1056
        %v1131 = vadd.f32 %v964, %v1058
        %v1132 = vadd.f32 %v965, %v1127
        %s1133 = scalar_lea.vmem %s1, 24
        %v1134 = vld [vmem:[%s1133] sm:$0xf]
        %1135 = vrot.lane.b32.xlu0 %v142, 92
        %v1136 = vpop.permute.xlu0 %1135
        %1137 = vrot.lane.b32.xlu0 %v149, 92
        %v1138 = vpop.permute.xlu0 %1137
        %1139 = vrot.lane.b32.xlu0 %v143, 92
        %v1140 = vpop.permute.xlu0 %1139
        %1141 = vrot.lane.b32.xlu0 %v150, 92
        %v1142 = vpop.permute.xlu0 %1141
        %vm1143 = vcmask 752640
        %v1144 = vsel %vm1143, %v1136, %v1138
        %v1145 = vsel %vm1143, %v1138, %v1140
        %v1146 = vsel %vm1143, %v1140, %v1142
        %v1148 = vsel %vm163, %v1134, 0
        %v1150 = vsel %vm167, %v1144, 0
        %v1152 = vsel %vm167, %v1145, 0
        %v1154 = vsel %vm167, %v1146, 0
        %1156 = vmatprep.subr.mxu0 %v1152
        %1157 = vmatpush1.msra.mxu0 %v1150
        %1158 = vmatprep.subr.mxu0 0.0
        %1159 = vmatpush1.msra.mxu0 0.0
        %1160 = vmatprep.subr.mxu0 0.0
        %1161 = vmatpush1.msra.mxu0 0.0
        %1162 = vmatprep.subr.mxu0 0.0
        %1163 = vmatpush1.msra.mxu0 0.0
        %1164 = vmatprep.subr.mxu0 0.0
        %1165 = vmatpush1.msra.mxu0 0.0
        %1166 = vmatprep.subr.mxu0 0.0
        %1167 = vmatpush1.msra.mxu0 0.0
        %1168 = vmatprep.subr.mxu0 0.0
        %1169 = vmatpush1.msra.mxu0 0.0
        %1170 = vmatprep.subr.mxu0 0.0
        %1171 = vmatpush1.msra.mxu0 0.0
        %1172 = vmatprep.subr.mxu0 0.0
        %1173 = vmatpush1.msra.mxu0 0.0
        %1174 = vmatprep.subr.mxu0 0.0
        %1175 = vmatpush1.msra.mxu0 0.0
        %1176 = vmatprep.subr.mxu0 0.0
        %1177 = vmatpush1.msra.mxu0 0.0
        %1178 = vmatprep.subr.mxu0 0.0
        %1179 = vmatpush1.msra.mxu0 0.0
        %1180 = vmatprep.subr.mxu0 0.0
        %1181 = vmatpush1.msra.mxu0 0.0
        %1182 = vmatprep.subr.mxu0 0.0
        %1183 = vmatpush1.msra.mxu0 0.0
        %1184 = vmatprep.subr.mxu0 0.0
        %1185 = vmatpush1.msra.mxu0 0.0
        %1186 = vmatprep.subr.mxu0 0.0
        %1187 = vmatpush1.msra.mxu0 0.0
        %1188 = vmatprep.subr.mxu0 0.0
        %1189 = vmatpush1.msra.mxu0 0.0
        %1190 = vmatprep.subr.mxu0 0.0
        %1191 = vmatpush1.msra.mxu0 0.0
        %1192 = vmatprep.subr.mxu0 0.0
        %1193 = vmatpush1.msra.mxu0 0.0
        %1194 = vmatprep.subr.mxu0 0.0
        %1195 = vmatpush1.msra.mxu0 0.0
        %1196 = vmatprep.subr.mxu0 0.0
        %1197 = vmatpush1.msra.mxu0 0.0
        %1198 = vmatprep.subr.mxu0 0.0
        %1199 = vmatpush1.msra.mxu0 0.0
        %1200 = vmatprep.subr.mxu0 0.0
        %1201 = vmatpush1.msra.mxu0 0.0
        %1202 = vmatprep.subr.mxu0 0.0
        %1203 = vmatpush1.msra.mxu0 0.0
        %1204 = vmatprep.subr.mxu0 0.0
        %1205 = vmatpush1.msra.mxu0 0.0
        %1206 = vmatprep.subr.mxu0 0.0
        %1207 = vmatpush1.msra.mxu0 0.0
        %1208 = vmatprep.subr.mxu0 0.0
        %1209 = vmatpush1.msra.mxu0 0.0
        %1210 = vmatprep.subr.mxu0 0.0
        %1211 = vmatpush1.msra.mxu0 0.0
        %1212 = vmatprep.subr.mxu0 0.0
        %1213 = vmatpush1.msra.mxu0 0.0
        %1214 = vmatprep.subr.mxu0 0.0
        %1215 = vmatpush1.msra.mxu0 0.0
        %1216 = vmatprep.subr.mxu0 0.0
        %1217 = vmatpush1.msra.mxu0 0.0
        %1218 = vmatprep.subr.mxu0 0.0
        %1219 = vmatpush1.msra.mxu0 0.0
        %1220 = vmatprep.mubr.f32.mxu0 0.0
        %1221 = vmatmul.mubr.f32.gmra.mrb[0].mxu0 %v1148
        %v1222 = vpop.f32.mrb[0].mxu0
        %v1223 = vadd.f32 0.0, %v1222
        %v1224 = vpop.f32.mrb[0].mxu0
        %v1225 = vadd.f32 0.0, %v1224
        %1226 = vdwg.mxu0
        %1227 = vmatprep.subr.mxu0 0.0
        %1228 = vmatpush1.msra.mxu0 %v1154
        %1229 = vmatprep.subr.mxu0 0.0
        %1230 = vmatpush1.msra.mxu0 0.0
        %1231 = vmatprep.subr.mxu0 0.0
        %1232 = vmatpush1.msra.mxu0 0.0
        %1233 = vmatprep.subr.mxu0 0.0
        %1234 = vmatpush1.msra.mxu0 0.0
        %1235 = vmatprep.subr.mxu0 0.0
        %1236 = vmatpush1.msra.mxu0 0.0
        %1237 = vmatprep.subr.mxu0 0.0
        %1238 = vmatpush1.msra.mxu0 0.0
        %1239 = vmatprep.subr.mxu0 0.0
        %1240 = vmatpush1.msra.mxu0 0.0
        %1241 = vmatprep.subr.mxu0 0.0
        %1242 = vmatpush1.msra.mxu0 0.0
        %1243 = vmatprep.subr.mxu0 0.0
        %1244 = vmatpush1.msra.mxu0 0.0
        %1245 = vmatprep.subr.mxu0 0.0
        %1246 = vmatpush1.msra.mxu0 0.0
        %1247 = vmatprep.subr.mxu0 0.0
        %1248 = vmatpush1.msra.mxu0 0.0
        %1249 = vmatprep.subr.mxu0 0.0
        %1250 = vmatpush1.msra.mxu0 0.0
        %1251 = vmatprep.subr.mxu0 0.0
        %1252 = vmatpush1.msra.mxu0 0.0
        %1253 = vmatprep.subr.mxu0 0.0
        %1254 = vmatpush1.msra.mxu0 0.0
        %1255 = vmatprep.subr.mxu0 0.0
        %1256 = vmatpush1.msra.mxu0 0.0
        %1257 = vmatprep.subr.mxu0 0.0
        %1258 = vmatpush1.msra.mxu0 0.0
        %1259 = vmatprep.subr.mxu0 0.0
        %1260 = vmatpush1.msra.mxu0 0.0
        %1261 = vmatprep.subr.mxu0 0.0
        %1262 = vmatpush1.msra.mxu0 0.0
        %1263 = vmatprep.subr.mxu0 0.0
        %1264 = vmatpush1.msra.mxu0 0.0
        %1265 = vmatprep.subr.mxu0 0.0
        %1266 = vmatpush1.msra.mxu0 0.0
        %1267 = vmatprep.subr.mxu0 0.0
        %1268 = vmatpush1.msra.mxu0 0.0
        %1269 = vmatprep.subr.mxu0 0.0
        %1270 = vmatpush1.msra.mxu0 0.0
        %1271 = vmatprep.subr.mxu0 0.0
        %1272 = vmatpush1.msra.mxu0 0.0
        %1273 = vmatprep.subr.mxu0 0.0
        %1274 = vmatpush1.msra.mxu0 0.0
        %1275 = vmatprep.subr.mxu0 0.0
        %1276 = vmatpush1.msra.mxu0 0.0
        %1277 = vmatprep.subr.mxu0 0.0
        %1278 = vmatpush1.msra.mxu0 0.0
        %1279 = vmatprep.subr.mxu0 0.0
        %1280 = vmatpush1.msra.mxu0 0.0
        %1281 = vmatprep.subr.mxu0 0.0
        %1282 = vmatpush1.msra.mxu0 0.0
        %1283 = vmatprep.subr.mxu0 0.0
        %1284 = vmatpush1.msra.mxu0 0.0
        %1285 = vmatprep.subr.mxu0 0.0
        %1286 = vmatpush1.msra.mxu0 0.0
        %1287 = vmatprep.subr.mxu0 0.0
        %1288 = vmatpush1.msra.mxu0 0.0
        %1289 = vmatprep.subr.mxu0 0.0
        %1290 = vmatpush1.msra.mxu0 0.0
        %1291 = vmatprep.mubr.f32.mxu0 0.0
        %1292 = vmatmul.mubr.f32.gmra.mrb[0].mxu0 %v1148
        %v1293 = vpop.f32.mrb[0].mxu0
        %v1294 = vadd.f32 0.0, %v1293
        %v1295 = vpop.f32.mrb[0].mxu0
        %1296 = vdwg.mxu0
        %v1297 = vadd.f32 %v1130, %v1223
        %v1298 = vadd.f32 %v1131, %v1225
        %v1299 = vadd.f32 %v1132, %v1294
        %s1300 = scalar_lea.vmem %s1, 28
        %v1301 = vld [vmem:[%s1300] sm:$0xf]
        %1302 = vrot.lane.b32.xlu0 %v142, 91
        %v1303 = vpop.permute.xlu0 %1302
        %1304 = vrot.lane.b32.xlu0 %v149, 91
        %v1305 = vpop.permute.xlu0 %1304
        %1306 = vrot.lane.b32.xlu0 %v143, 91
        %v1307 = vpop.permute.xlu0 %1306
        %1308 = vrot.lane.b32.xlu0 %v150, 91
        %v1309 = vpop.permute.xlu0 %1308
        %vm1310 = vcmask 744448
        %v1311 = vsel %vm1310, %v1303, %v1305
        %v1312 = vsel %vm1310, %v1305, %v1307
        %v1313 = vsel %vm1310, %v1307, %v1309
        %v1315 = vsel %vm163, %v1301, 0
        %v1317 = vsel %vm167, %v1311, 0
        %v1319 = vsel %vm167, %v1312, 0
        %v1321 = vsel %vm167, %v1313, 0
        %1323 = vmatprep.subr.mxu0 %v1319
        %1324 = vmatpush1.msra.mxu0 %v1317
        %1325 = vmatprep.subr.mxu0 0.0
        %1326 = vmatpush1.msra.mxu0 0.0
        %1327 = vmatprep.subr.mxu0 0.0
        %1328 = vmatpush1.msra.mxu0 0.0
        %1329 = vmatprep.subr.mxu0 0.0
        %1330 = vmatpush1.msra.mxu0 0.0
        %1331 = vmatprep.subr.mxu0 0.0
        %1332 = vmatpush1.msra.mxu0 0.0
        %1333 = vmatprep.subr.mxu0 0.0
        %1334 = vmatpush1.msra.mxu0 0.0
        %1335 = vmatprep.subr.mxu0 0.0
        %1336 = vmatpush1.msra.mxu0 0.0
        %1337 = vmatprep.subr.mxu0 0.0
        %1338 = vmatpush1.msra.mxu0 0.0
        %1339 = vmatprep.subr.mxu0 0.0
        %1340 = vmatpush1.msra.mxu0 0.0
        %1341 = vmatprep.subr.mxu0 0.0
        %1342 = vmatpush1.msra.mxu0 0.0
        %1343 = vmatprep.subr.mxu0 0.0
        %1344 = vmatpush1.msra.mxu0 0.0
        %1345 = vmatprep.subr.mxu0 0.0
        %1346 = vmatpush1.msra.mxu0 0.0
        %1347 = vmatprep.subr.mxu0 0.0
        %1348 = vmatpush1.msra.mxu0 0.0
        %1349 = vmatprep.subr.mxu0 0.0
        %1350 = vmatpush1.msra.mxu0 0.0
        %1351 = vmatprep.subr.mxu0 0.0
        %1352 = vmatpush1.msra.mxu0 0.0
        %1353 = vmatprep.subr.mxu0 0.0
        %1354 = vmatpush1.msra.mxu0 0.0
        %1355 = vmatprep.subr.mxu0 0.0
        %1356 = vmatpush1.msra.mxu0 0.0
        %1357 = vmatprep.subr.mxu0 0.0
        %1358 = vmatpush1.msra.mxu0 0.0
        %1359 = vmatprep.subr.mxu0 0.0
        %1360 = vmatpush1.msra.mxu0 0.0
        %1361 = vmatprep.subr.mxu0 0.0
        %1362 = vmatpush1.msra.mxu0 0.0
        %1363 = vmatprep.subr.mxu0 0.0
        %1364 = vmatpush1.msra.mxu0 0.0
        %1365 = vmatprep.subr.mxu0 0.0
        %1366 = vmatpush1.msra.mxu0 0.0
        %1367 = vmatprep.subr.mxu0 0.0
        %1368 = vmatpush1.msra.mxu0 0.0
        %1369 = vmatprep.subr.mxu0 0.0
        %1370 = vmatpush1.msra.mxu0 0.0
        %1371 = vmatprep.subr.mxu0 0.0
        %1372 = vmatpush1.msra.mxu0 0.0
        %1373 = vmatprep.subr.mxu0 0.0
        %1374 = vmatpush1.msra.mxu0 0.0
        %1375 = vmatprep.subr.mxu0 0.0
        %1376 = vmatpush1.msra.mxu0 0.0
        %1377 = vmatprep.subr.mxu0 0.0
        %1378 = vmatpush1.msra.mxu0 0.0
        %1379 = vmatprep.subr.mxu0 0.0
        %1380 = vmatpush1.msra.mxu0 0.0
        %1381 = vmatprep.subr.mxu0 0.0
        %1382 = vmatpush1.msra.mxu0 0.0
        %1383 = vmatprep.subr.mxu0 0.0
        %1384 = vmatpush1.msra.mxu0 0.0
        %1385 = vmatprep.subr.mxu0 0.0
        %1386 = vmatpush1.msra.mxu0 0.0
        %1387 = vmatprep.mubr.f32.mxu0 0.0
        %1388 = vmatmul.mubr.f32.gmra.mrb[0].mxu0 %v1315
        %v1389 = vpop.f32.mrb[0].mxu0
        %v1390 = vadd.f32 0.0, %v1389
        %v1391 = vpop.f32.mrb[0].mxu0
        %v1392 = vadd.f32 0.0, %v1391
        %1393 = vdwg.mxu0
        %1394 = vmatprep.subr.mxu0 0.0
        %1395 = vmatpush1.msra.mxu0 %v1321
        %1396 = vmatprep.subr.mxu0 0.0
        %1397 = vmatpush1.msra.mxu0 0.0
        %1398 = vmatprep.subr.mxu0 0.0
        %1399 = vmatpush1.msra.mxu0 0.0
        %1400 = vmatprep.subr.mxu0 0.0
        %1401 = vmatpush1.msra.mxu0 0.0
        %1402 = vmatprep.subr.mxu0 0.0
        %1403 = vmatpush1.msra.mxu0 0.0
        %1404 = vmatprep.subr.mxu0 0.0
        %1405 = vmatpush1.msra.mxu0 0.0
        %1406 = vmatprep.subr.mxu0 0.0
        %1407 = vmatpush1.msra.mxu0 0.0
        %1408 = vmatprep.subr.mxu0 0.0
        %1409 = vmatpush1.msra.mxu0 0.0
        %1410 = vmatprep.subr.mxu0 0.0
        %1411 = vmatpush1.msra.mxu0 0.0
        %1412 = vmatprep.subr.mxu0 0.0
        %1413 = vmatpush1.msra.mxu0 0.0
        %1414 = vmatprep.subr.mxu0 0.0
        %1415 = vmatpush1.msra.mxu0 0.0
        %1416 = vmatprep.subr.mxu0 0.0
        %1417 = vmatpush1.msra.mxu0 0.0
        %1418 = vmatprep.subr.mxu0 0.0
        %1419 = vmatpush1.msra.mxu0 0.0
        %1420 = vmatprep.subr.mxu0 0.0
        %1421 = vmatpush1.msra.mxu0 0.0
        %1422 = vmatprep.subr.mxu0 0.0
        %1423 = vmatpush1.msra.mxu0 0.0
        %1424 = vmatprep.subr.mxu0 0.0
        %1425 = vmatpush1.msra.mxu0 0.0
        %1426 = vmatprep.subr.mxu0 0.0
        %1427 = vmatpush1.msra.mxu0 0.0
        %1428 = vmatprep.subr.mxu0 0.0
        %1429 = vmatpush1.msra.mxu0 0.0
        %1430 = vmatprep.subr.mxu0 0.0
        %1431 = vmatpush1.msra.mxu0 0.0
        %1432 = vmatprep.subr.mxu0 0.0
        %1433 = vmatpush1.msra.mxu0 0.0
        %1434 = vmatprep.subr.mxu0 0.0
        %1435 = vmatpush1.msra.mxu0 0.0
        %1436 = vmatprep.subr.mxu0 0.0
        %1437 = vmatpush1.msra.mxu0 0.0
        %1438 = vmatprep.subr.mxu0 0.0
        %1439 = vmatpush1.msra.mxu0 0.0
        %1440 = vmatprep.subr.mxu0 0.0
        %1441 = vmatpush1.msra.mxu0 0.0
        %1442 = vmatprep.subr.mxu0 0.0
        %1443 = vmatpush1.msra.mxu0 0.0
        %1444 = vmatprep.subr.mxu0 0.0
        %1445 = vmatpush1.msra.mxu0 0.0
        %1446 = vmatprep.subr.mxu0 0.0
        %1447 = vmatpush1.msra.mxu0 0.0
        %1448 = vmatprep.subr.mxu0 0.0
        %1449 = vmatpush1.msra.mxu0 0.0
        %1450 = vmatprep.subr.mxu0 0.0
        %1451 = vmatpush1.msra.mxu0 0.0
        %1452 = vmatprep.subr.mxu0 0.0
        %1453 = vmatpush1.msra.mxu0 0.0
        %1454 = vmatprep.subr.mxu0 0.0
        %1455 = vmatpush1.msra.mxu0 0.0
        %1456 = vmatprep.subr.mxu0 0.0
        %1457 = vmatpush1.msra.mxu0 0.0
        %1458 = vmatprep.mubr.f32.mxu0 0.0
        %1459 = vmatmul.mubr.f32.gmra.mrb[0].mxu0 %v1315
        %v1460 = vpop.f32.mrb[0].mxu0
        %v1461 = vadd.f32 0.0, %v1460
        %v1462 = vpop.f32.mrb[0].mxu0
        %1463 = vdwg.mxu0
        %v1464 = vadd.f32 %v1297, %v1390
        %v1465 = vadd.f32 %v1298, %v1392
        %v1466 = vadd.f32 %v1299, %v1461
        %s1467 = scalar_lea.vmem %s1, 32
        %v1468 = vld [vmem:[%s1467] sm:$0xf]
        %1469 = vrot.lane.b32.xlu0 %v142, 90
        %v1470 = vpop.permute.xlu0 %1469
        %1471 = vrot.lane.b32.xlu0 %v149, 90
        %v1472 = vpop.permute.xlu0 %1471
        %1473 = vrot.lane.b32.xlu0 %v143, 90
        %v1474 = vpop.permute.xlu0 %1473
        %1475 = vrot.lane.b32.xlu0 %v150, 90
        %v1476 = vpop.permute.xlu0 %1475
        %vm1477 = vcmask 736256
        %v1478 = vsel %vm1477, %v1470, %v1472
        %v1479 = vsel %vm1477, %v1472, %v1474
        %v1480 = vsel %vm1477, %v1474, %v1476
        %v1482 = vsel %vm163, %v1468, 0
        %v1484 = vsel %vm167, %v1478, 0
        %v1486 = vsel %vm167, %v1479, 0
        %v1488 = vsel %vm167, %v1480, 0
        %1490 = vmatprep.subr.mxu0 %v1486
        %1491 = vmatpush1.msra.mxu0 %v1484
        %1492 = vmatprep.subr.mxu0 0.0
        %1493 = vmatpush1.msra.mxu0 0.0
        %1494 = vmatprep.subr.mxu0 0.0
        %1495 = vmatpush1.msra.mxu0 0.0
        %1496 = vmatprep.subr.mxu0 0.0
        %1497 = vmatpush1.msra.mxu0 0.0
        %1498 = vmatprep.subr.mxu0 0.0
        %1499 = vmatpush1.msra.mxu0 0.0
        %1500 = vmatprep.subr.mxu0 0.0
        %1501 = vmatpush1.msra.mxu0 0.0
        %1502 = vmatprep.subr.mxu0 0.0
        %1503 = vmatpush1.msra.mxu0 0.0
        %1504 = vmatprep.subr.mxu0 0.0
        %1505 = vmatpush1.msra.mxu0 0.0
        %1506 = vmatprep.subr.mxu0 0.0
        %1507 = vmatpush1.msra.mxu0 0.0
        %1508 = vmatprep.subr.mxu0 0.0
        %1509 = vmatpush1.msra.mxu0 0.0
        %1510 = vmatprep.subr.mxu0 0.0
        %1511 = vmatpush1.msra.mxu0 0.0
        %1512 = vmatprep.subr.mxu0 0.0
        %1513 = vmatpush1.msra.mxu0 0.0
        %1514 = vmatprep.subr.mxu0 0.0
        %1515 = vmatpush1.msra.mxu0 0.0
        %1516 = vmatprep.subr.mxu0 0.0
        %1517 = vmatpush1.msra.mxu0 0.0
        %1518 = vmatprep.subr.mxu0 0.0
        %1519 = vmatpush1.msra.mxu0 0.0
        %1520 = vmatprep.subr.mxu0 0.0
        %1521 = vmatpush1.msra.mxu0 0.0
        %1522 = vmatprep.subr.mxu0 0.0
        %1523 = vmatpush1.msra.mxu0 0.0
        %1524 = vmatprep.subr.mxu0 0.0
        %1525 = vmatpush1.msra.mxu0 0.0
        %1526 = vmatprep.subr.mxu0 0.0
        %1527 = vmatpush1.msra.mxu0 0.0
        %1528 = vmatprep.subr.mxu0 0.0
        %1529 = vmatpush1.msra.mxu0 0.0
        %1530 = vmatprep.subr.mxu0 0.0
        %1531 = vmatpush1.msra.mxu0 0.0
        %1532 = vmatprep.subr.mxu0 0.0
        %1533 = vmatpush1.msra.mxu0 0.0
        %1534 = vmatprep.subr.mxu0 0.0
        %1535 = vmatpush1.msra.mxu0 0.0
        %1536 = vmatprep.subr.mxu0 0.0
        %1537 = vmatpush1.msra.mxu0 0.0
        %1538 = vmatprep.subr.mxu0 0.0
        %1539 = vmatpush1.msra.mxu0 0.0
        %1540 = vmatprep.subr.mxu0 0.0
        %1541 = vmatpush1.msra.mxu0 0.0
        %1542 = vmatprep.subr.mxu0 0.0
        %1543 = vmatpush1.msra.mxu0 0.0
        %1544 = vmatprep.subr.mxu0 0.0
        %1545 = vmatpush1.msra.mxu0 0.0
        %1546 = vmatprep.subr.mxu0 0.0
        %1547 = vmatpush1.msra.mxu0 0.0
        %1548 = vmatprep.subr.mxu0 0.0
        %1549 = vmatpush1.msra.mxu0 0.0
        %1550 = vmatprep.subr.mxu0 0.0
        %1551 = vmatpush1.msra.mxu0 0.0
        %1552 = vmatprep.subr.mxu0 0.0
        %1553 = vmatpush1.msra.mxu0 0.0
        %1554 = vmatprep.mubr.f32.mxu0 0.0
        %1555 = vmatmul.mubr.f32.gmra.mrb[0].mxu0 %v1482
        %v1556 = vpop.f32.mrb[0].mxu0
        %v1557 = vadd.f32 0.0, %v1556
        %v1558 = vpop.f32.mrb[0].mxu0
        %v1559 = vadd.f32 0.0, %v1558
        %1560 = vdwg.mxu0
        %1561 = vmatprep.subr.mxu0 0.0
        %1562 = vmatpush1.msra.mxu0 %v1488
        %1563 = vmatprep.subr.mxu0 0.0
        %1564 = vmatpush1.msra.mxu0 0.0
        %1565 = vmatprep.subr.mxu0 0.0
        %1566 = vmatpush1.msra.mxu0 0.0
        %1567 = vmatprep.subr.mxu0 0.0
        %1568 = vmatpush1.msra.mxu0 0.0
        %1569 = vmatprep.subr.mxu0 0.0
        %1570 = vmatpush1.msra.mxu0 0.0
        %1571 = vmatprep.subr.mxu0 0.0
        %1572 = vmatpush1.msra.mxu0 0.0
        %1573 = vmatprep.subr.mxu0 0.0
        %1574 = vmatpush1.msra.mxu0 0.0
        %1575 = vmatprep.subr.mxu0 0.0
        %1576 = vmatpush1.msra.mxu0 0.0
        %1577 = vmatprep.subr.mxu0 0.0
        %1578 = vmatpush1.msra.mxu0 0.0
        %1579 = vmatprep.subr.mxu0 0.0
        %1580 = vmatpush1.msra.mxu0 0.0
        %1581 = vmatprep.subr.mxu0 0.0
        %1582 = vmatpush1.msra.mxu0 0.0
        %1583 = vmatprep.subr.mxu0 0.0
        %1584 = vmatpush1.msra.mxu0 0.0
        %1585 = vmatprep.subr.mxu0 0.0
        %1586 = vmatpush1.msra.mxu0 0.0
        %1587 = vmatprep.subr.mxu0 0.0
        %1588 = vmatpush1.msra.mxu0 0.0
        %1589 = vmatprep.subr.mxu0 0.0
        %1590 = vmatpush1.msra.mxu0 0.0
        %1591 = vmatprep.subr.mxu0 0.0
        %1592 = vmatpush1.msra.mxu0 0.0
        %1593 = vmatprep.subr.mxu0 0.0
        %1594 = vmatpush1.msra.mxu0 0.0
        %1595 = vmatprep.subr.mxu0 0.0
        %1596 = vmatpush1.msra.mxu0 0.0
        %1597 = vmatprep.subr.mxu0 0.0
        %1598 = vmatpush1.msra.mxu0 0.0
        %1599 = vmatprep.subr.mxu0 0.0
        %1600 = vmatpush1.msra.mxu0 0.0
        %1601 = vmatprep.subr.mxu0 0.0
        %1602 = vmatpush1.msra.mxu0 0.0
        %1603 = vmatprep.subr.mxu0 0.0
        %1604 = vmatpush1.msra.mxu0 0.0
        %1605 = vmatprep.subr.mxu0 0.0
        %1606 = vmatpush1.msra.mxu0 0.0
        %1607 = vmatprep.subr.mxu0 0.0
        %1608 = vmatpush1.msra.mxu0 0.0
        %1609 = vmatprep.subr.mxu0 0.0
        %1610 = vmatpush1.msra.mxu0 0.0
        %1611 = vmatprep.subr.mxu0 0.0
        %1612 = vmatpush1.msra.mxu0 0.0
        %1613 = vmatprep.subr.mxu0 0.0
        %1614 = vmatpush1.msra.mxu0 0.0
        %1615 = vmatprep.subr.mxu0 0.0
        %1616 = vmatpush1.msra.mxu0 0.0
        %1617 = vmatprep.subr.mxu0 0.0
        %1618 = vmatpush1.msra.mxu0 0.0
        %1619 = vmatprep.subr.mxu0 0.0
        %1620 = vmatpush1.msra.mxu0 0.0
        %1621 = vmatprep.subr.mxu0 0.0
        %1622 = vmatpush1.msra.mxu0 0.0
        %1623 = vmatprep.subr.mxu0 0.0
        %1624 = vmatpush1.msra.mxu0 0.0
        %1625 = vmatprep.mubr.f32.mxu0 0.0
        %1626 = vmatmul.mubr.f32.gmra.mrb[0].mxu0 %v1482
        %v1627 = vpop.f32.mrb[0].mxu0
        %v1628 = vadd.f32 0.0, %v1627
        %v1629 = vpop.f32.mrb[0].mxu0
        %1630 = vdwg.mxu0
        %v1631 = vadd.f32 %v1464, %v1557
        %v1632 = vadd.f32 %v1465, %v1559
        %v1633 = vadd.f32 %v1466, %v1628
        %v1636 = vcombine.low %v1631, %v1632
        %1638 = vst [vmem:[%s136] sm:$0xff] %v1636
        %1639 = vst [vmem:[%s136 + $0x8] sm:$0xf] %v1633
        %s1640 = sand.u32 %s71, 1
        %s1641 = scalar_lea.sflag [#allocation3], %s1640
        %s1642 = sand.u32 %s71, 1
        %s1643 = smul.addr %s1642, 12
        %s1644 = scalar_lea.vmem [#allocation2], %s1643
        // Predicated region
        $region29: #{tpu_custom_call.1} parent=27 // pred_check
          %p1645 = pneg %p81
        $region30: #{tpu_custom_call.1} parent=27 // pred_check_branch
          %1647 = sbr.rel (%p1645) target = $region32
        $region31: #{tpu_custom_call.1} parent=27 // pred_region
          %s1649 = ssub.s32 192, 192
          %1650 = vsyncadd %s1641, %s1649
          %s1651 = smul.addr %s16, 3
          %s1652 = smul.addr %s1651, 64
          %s1653 = scalar_lea.hbm %s2, %s1652
          %s1655 = sshll.u32 %s1644, 4
          %s1656 = int_to_ptr.vmem [resolvable:$true] %s1655
          %1658 = dma.vmem_to_hbm [thread:$0]  %s1656, 192, %s1653, %s1641
        $region32: #{tpu_custom_call.1} parent=27 // pred_fallthru
          _
      $region28: #{tpu_custom_call.1} parent=5 // pred_fallthru
        _
      %p1659 = scmp.le.s32.totalorder 2, %s11
      // Predicated region
      $region33: #{tpu_custom_call.1} parent=5 // pred_check
        %p1660 = pneg %p1659
      $region34: #{tpu_custom_call.1} parent=5 // pred_check_branch
        %1662 = sbr.rel (%p1660) target = $region36
      $region35: #{tpu_custom_call.1} parent=5 // pred_region
        %s1663 = ssub.s32 %s11, 2
        // Predicated region
        $region37: #{tpu_custom_call.1} parent=35 // pred_check
          %p1664 = pneg %p87
        $region38: #{tpu_custom_call.1} parent=35 // pred_check_branch
          %1666 = sbr.rel (%p1664) target = $region40
        $region39: #{tpu_custom_call.1} parent=35 // pred_region
          %s1667 = sand.u32 %s72, 1
          %s1668 = scalar_lea.sflag [#allocation3], %s1667
          %s1669 = sand.u32 %s72, 1
          %s1670 = smul.addr %s1669, 12
          %s1671 = scalar_lea.vmem [#allocation2], %s1670
          %1672 = dma.done %s1668, 192
        $region40: #{tpu_custom_call.1} parent=35 // pred_fallthru
          _
      $region36: #{tpu_custom_call.1} parent=5 // pred_fallthru
        _
    $region6: #{tpu_custom_call.1} parent=1 // loop_footer
      %s15 = sadd.s32 1, %s11
    $region7: #{tpu_custom_call.1} parent=1 // loop_footer_branch
      %10 = sbr.rel target = $region3
    $region8: #{tpu_custom_call.1} parent=1 // loop_exit
      _
    %1673 = vsyncpa [#allocation3], 1
    %s1674 = scalar_lea.sflag [#allocation3], 1
    %1675 = vsyncpa %s1674, 1

</llo_original>
